<compile_context>
chip_gen: v7x
topology: tpu7x:2x2x1
jax: 0.10.0
libtpu: 0.0.40
codegen_flags: <defaults>
</compile_context>

<pallas_src>
import jax
import jax.numpy as jnp
from jax.experimental import pallas as pl
from jax.experimental.pallas import tpu as pltpu

_LANE = 128
_BN_EPS = 1e-5


def _round_up(v, m):
    return (v + m - 1) // m * m


# --------------------------- per-generation tuning helpers ---------------------------
def _device_kind():
    try:
        return jax.devices()[0].device_kind.lower()
    except Exception:
        return ""


def _default_row_tile():
    # v6e / v7x have a 256-wide MXU -> 256-row tiles; v5e (and older) have 128-wide MXUs
    # and are memory-bound here anyway, so keep 128.
    kind = _device_kind()
    return 256 if ("v6" in kind or "v7" in kind or "7x" in kind) else 128


_VMEM_LIMIT_CACHE = None


def _vmem_limit_bytes():
    """~3/4 of physical per-core VMEM, capped at 100 MiB (v7x-safe fallback = 48 MiB)."""
    global _VMEM_LIMIT_CACHE
    if _VMEM_LIMIT_CACHE is None:
        try:
            phys = int(pltpu.get_tpu_info().vmem_capacity_bytes)
        except Exception:
            phys = 64 << 20          # conservative: v7x per-TensorCore size
        _VMEM_LIMIT_CACHE = min(100 << 20, (phys * 3) // 4)
    return _VMEM_LIMIT_CACHE


_UNSET = object()
_CONST_PIPELINE_MODE = _UNSET


def _const_pipeline_mode():
    """pl.Buffered(1) on constant-index operands halves their resident VMEM footprint.
    Probe once with a tiny kernel; fall back to default double-buffering if unsupported."""
    global _CONST_PIPELINE_MODE
    if _CONST_PIPELINE_MODE is _UNSET:
        def _copy(x_ref, o_ref):
            o_ref[...] = x_ref[...]
        try:
            spec_in = pl.BlockSpec((8, 128), lambda i: (0, 0),
                                   pipeline_mode=pl.Buffered(buffer_count=1))
            probe = pl.pallas_call(
                _copy,
                out_shape=jax.ShapeDtypeStruct((16, 128), jnp.float32),
                grid=(2,),
                in_specs=[spec_in],
                out_specs=pl.BlockSpec((8, 128), lambda i: (i, 0)),
            )
            jax.block_until_ready(probe(jnp.zeros((16, 128), jnp.float32)))
            _CONST_PIPELINE_MODE = pl.Buffered(buffer_count=1)
        except Exception:
            _CONST_PIPELINE_MODE = None
    return _CONST_PIPELINE_MODE


# ------------------------ fused single-block kernel (small N) ------------------------
def _fused_kernel(a_ref, x_ref, w1_ref, b1_ref, g_ref, bt_ref, w2_ref, b2_ref, o_ref):
    """conv1 -> BatchNorm(batch stats) -> ReLU -> (eval dropout) -> conv2, all in VMEM."""
    cp = x_ref.shape[1]
    hp = g_ref.shape[1]
    a = a_ref[...]                                                   # [N, N]  bf16
    x = x_ref[...]                                                   # [N, Cp] bf16

    # SAGEConv1: lin_l(mean-agg) + lin_r(x); two dots on static weight slices (no concat).
    agg1 = jnp.dot(a, x, preferred_element_type=jnp.float32)
    h = (jnp.dot(agg1.astype(jnp.bfloat16), w1_ref[:cp, :],
                 preferred_element_type=jnp.float32)
         + jnp.dot(x, w1_ref[cp:, :], preferred_element_type=jnp.float32)
         + b1_ref[...])

    # BatchNorm1d (training-mode batch statistics, biased variance) + ReLU.
    mu = jnp.mean(h, axis=0, keepdims=True)
    var = jnp.mean((h - mu) * (h - mu), axis=0, keepdims=True)
    hn = (h - mu) * jax.lax.rsqrt(var + _BN_EPS) * g_ref[...] + bt_ref[...]
    # Dropout(p=0.2): eval-mode identity (see TODO at top of file).
    hn = jnp.maximum(hn, 0.0).astype(jnp.bfloat16)

    # SAGEConv2.
    agg2 = jnp.dot(a, hn, preferred_element_type=jnp.float32)
    o_ref[...] = (jnp.dot(agg2.astype(jnp.bfloat16), w2_ref[:hp, :],
                          preferred_element_type=jnp.float32)
                  + jnp.dot(hn, w2_ref[hp:, :], preferred_element_type=jnp.float32)
                  + b2_ref[...])


# ------------------------------- tiled-path kernels -----------------------------------
def _conv1_kernel(a_ref, xf_ref, xs_ref, w1_ref, b1_ref, h_ref, st_ref):
    """Row tile of SAGEConv1; also emits this tile's BN partial sums (f32)."""
    cp = xf_ref.shape[1]
    hp = h_ref.shape[1]
    agg = jnp.dot(a_ref[...], xf_ref[...], preferred_element_type=jnp.float32)
    h = (jnp.dot(agg.astype(jnp.bfloat16), w1_ref[:cp, :],
                 preferred_element_type=jnp.float32)
         + jnp.dot(xs_ref[...], w1_ref[cp:, :], preferred_element_type=jnp.float32)
         + b1_ref[...])
    h_ref[...] = h.astype(jnp.bfloat16)                      # bf16 intermediate to HBM
    s = jnp.sum(h, axis=0, keepdims=True)                    # stats from f32 h
    ss = jnp.sum(h * h, axis=0, keepdims=True)
    st_ref[...] = jnp.concatenate([s, ss, jnp.zeros((6, hp), jnp.float32)], axis=0)


def _bn_relu_kernel(h_ref, scale_ref, shift_ref, hn_ref):
    """Row-tiled BN apply (precomputed scale/shift) + ReLU; dropout = eval identity."""
    h = h_ref[...].astype(jnp.float32)
    hn_ref[...] = jnp.maximum(h * scale_ref[...] + shift_ref[...], 0.0).astype(jnp.bfloat16)


def _conv2_kernel(a_ref, hf_ref, hs_ref, w2_ref, b2_ref, o_ref):
    hp = hf_ref.shape[1]
    agg = jnp.dot(a_ref[...], hf_ref[...], preferred_element_type=jnp.float32)
    o_ref[...] = (jnp.dot(agg.astype(jnp.bfloat16), w2_ref[:hp, :],
                          preferred_element_type=jnp.float32)
                  + jnp.dot(hs_ref[...], w2_ref[hp:, :], preferred_element_type=jnp.float32)
                  + b2_ref[...])


# ------------------------------------ wrappers -----------------------------------------
def _fused_call(a, x, params, N, Cp, Hp, Op, vmem_limit):
    full = lambda shape: pl.BlockSpec(shape, lambda: (0, 0))
    return pl.pallas_call(
        _fused_kernel,
        out_shape=jax.ShapeDtypeStruct((N, Op), jnp.float32),
        in_specs=[full((N, N)), full((N, Cp)), full((2 * Cp, Hp)), full((1, Hp)),
                  full((1, Hp)), full((1, Hp)), full((2 * Hp, Op)), full((1, Op))],
        out_specs=full((N, Op)),
        compiler_params=pltpu.CompilerParams(vmem_limit_bytes=vmem_limit),
    )(a, x, params["w1"], params["b1"], params["gamma"], params["beta"],
      params["w2"], params["b2"])


def _tiled_call(a, x, params, N, Cp, Hp, Op, tm, vmem_limit):
    Np = _round_up(N, tm)
    ntiles = Np // tm
    if Np != N:   # pad rows/cols so the pipelined, aligned row-tiled path is kept for any N
        a = jnp.zeros((Np, Np), jnp.bfloat16).at[:N, :N].set(a)
        x = jnp.zeros((Np, Cp), jnp.bfloat16).at[:N, :].set(x)

    pm = _const_pipeline_mode()
    pm_kw = {} if pm is None else {"pipeline_mode": pm}

    def const2(shape):     # VMEM-resident across the row grid (single-buffered if possible)
        return pl.BlockSpec(shape, lambda i: (0, 0), **pm_kw)

    def row2(shape):
        return pl.BlockSpec(shape, lambda i: (i, 0))

    mm_params = pltpu.CompilerParams(dimension_semantics=("parallel",),
                                     vmem_limit_bytes=vmem_limit)

    # ---- pass 1: SAGEConv1 (row-tiled) + per-tile BN partial sums, h stored as bf16 ----
    h, stats = pl.pallas_call(
        _conv1_kernel,
        out_shape=(jax.ShapeDtypeStruct((Np, Hp), jnp.bfloat16),
                   jax.ShapeDtypeStruct((ntiles, 8, Hp), jnp.float32)),
        grid=(ntiles,),
        in_specs=[row2((tm, Np)), const2((Np, Cp)), row2((tm, Cp)),
                  const2((2 * Cp, Hp)), const2((1, Hp))],
        out_specs=(row2((tm, Hp)),
                   pl.BlockSpec((None, 8, Hp), lambda i: (i, 0, 0))),
        compiler_params=mm_params,
    )(a, x, x, params["w1"], params["b1"])

    # ---- finalize BN batch statistics (tiny [ntiles, Hp] reduction in plain JAX).
    # Padded rows of h are exactly b1 (agg = 0, x_self = 0), so remove them closed-form.
    n_pad = Np - N
    b1 = params["b1"]
    sum_h = jnp.sum(stats[:, 0, :], axis=0, keepdims=True) - n_pad * b1
    sumsq_h = jnp.sum(stats[:, 1, :], axis=0, keepdims=True) - n_pad * b1 * b1
    mu = sum_h / N
    var = sumsq_h / N - mu * mu                       # biased variance, like torch BN
    scale = params["gamma"] * jax.lax.rsqrt(var + _BN_EPS)
    shift = params["beta"] - mu * scale

    # ---- pass 2: row-tiled BN + ReLU (+ eval-mode dropout identity) ----
    hn = pl.pallas_call(
        _bn_relu_kernel,
        out_shape=jax.ShapeDtypeStruct((Np, Hp), jnp.bfloat16),
        grid=(ntiles,),
        in_specs=[row2((tm, Hp)), const2((1, Hp)), const2((1, Hp))],
        out_specs=row2((tm, Hp)),
        compiler_params=mm_params,
    )(h, scale, shift)

    # ---- pass 3: SAGEConv2 (row-tiled) ----
    out_pad = pl.pallas_call(
        _conv2_kernel,
        out_shape=jax.ShapeDtypeStruct((Np, Op), jnp.float32),
        grid=(ntiles,),
        in_specs=[row2((tm, Np)), const2((Np, Hp)), row2((tm, Hp)),
                  const2((2 * Hp, Op)), const2((1, Op))],
        out_specs=row2((tm, Op)),
        compiler_params=mm_params,
    )(a, hn, hn, params["w2"], params["b2"])

    return out_pad[:N]


def graphsage_forward(x, a_norm, params, out_channels, *, force_tiled=False, tm=None):
    """x: [N, Cin] f32, a_norm: [N, N] f32 row-normalized adjacency, params: padded weights."""
    N, Cin = x.shape
    Cp = params["w1"].shape[0] // 2
    Hp = params["w1"].shape[1]
    Op = params["w2"].shape[1]
    vmem_limit = _vmem_limit_bytes()
    if tm is None:
        tm = _default_row_tile()

    a_bf16 = a_norm.astype(jnp.bfloat16)
    x_pad = jnp.zeros((N, Cp), jnp.bfloat16).at[:, :Cin].set(x.astype(jnp.bfloat16))

    # Fused single-block path if the whole problem fits comfortably in VMEM.
    fused_bytes = (2 * N * N                                   # bf16 adjacency
                   + N * (2 * Cp + 4 * Hp + 2 * Hp + 4 * Op)   # x / h / hn / out
                   + 2 * (2 * Cp * Hp + 2 * Hp * Op))          # bf16 weights
    use_fused = (not force_tiled) and fused_bytes <= vmem_limit // 2

    if use_fused:
        out_pad = _fused_call(a_bf16, x_pad, params, N, Cp, Hp, Op, vmem_limit)
    else:
        out_pad = _tiled_call(a_bf16, x_pad, params, N, Cp, Hp, Op, tm, vmem_limit)
    return out_pad[:, :out_channels]


# ------------------------------ glue / parameters --------------------------------
def build_normalized_adjacency(edge_index, num_nodes):
    """Dense mean-aggregation matrix: A[i, j] = 1/indeg(i) for each edge j->i."""
    src = edge_index[0]   # j (source / neighbor)
    dst = edge_index[1]   # i (target)
    a = jnp.zeros((num_nodes, num_nodes), jnp.float32).at[dst, src].add(1.0)
    deg = jnp.sum(a, axis=1, keepdims=True)
    return a / jnp.maximum(deg, 1.0)


def init_params(key, in_channels, hidden_channels, out_channels):
    ks = jax.random.split(key, 6)
    s1 = 1.0 / jnp.sqrt(in_channels)
    s2 = 1.0 / jnp.sqrt(hidden_channels)
    w1l = jax.random.uniform(ks[0], (hidden_channels, in_channels), jnp.float32, -s1, s1)
    w1r = jax.random.uniform(ks[1], (hidden_channels, in_channels), jnp.float32, -s1, s1)
    w2l = jax.random.uniform(ks[2], (out_channels, hidden_channels), jnp.float32, -s2, s2)
    w2r = jax.random.uniform(ks[3], (out_channels, hidden_channels), jnp.float32, -s2, s2)
    b1l = jax.random.uniform(ks[4], (hidden_channels,), jnp.float32, -s1, s1)
    b2l = jax.random.uniform(ks[5], (out_channels,), jnp.float32, -s2, s2)

    Cp = _round_up(in_channels, _LANE)
    Hp = _round_up(hidden_channels, _LANE)
    Op = _round_up(out_channels, _LANE)

    # Stacked, lane-padded weights:  rows [0:Cp] = W_l^T (aggregated), [Cp:2Cp] = W_r^T (self)
    w1 = jnp.zeros((2 * Cp, Hp), jnp.float32)
    w1 = w1.at[:in_channels, :hidden_channels].set(w1l.T)
    w1 = w1.at[Cp:Cp + in_channels, :hidden_channels].set(w1r.T)
    w2 = jnp.zeros((2 * Hp, Op), jnp.float32)
    w2 = w2.at[:hidden_channels, :out_channels].set(w2l.T)
    w2 = w2.at[Hp:Hp + hidden_channels, :out_channels].set(w2r.T)

    b1 = jnp.zeros((1, Hp), jnp.float32).at[0, :hidden_channels].set(b1l)
    b2 = jnp.zeros((1, Op), jnp.float32).at[0, :out_channels].set(b2l)
    gamma = jnp.zeros((1, Hp), jnp.float32).at[:, :hidden_channels].set(1.0)
    beta = jnp.zeros((1, Hp), jnp.float32)

    return {"w1": w1.astype(jnp.bfloat16), "b1": b1,
            "gamma": gamma, "beta": beta,
            "w2": w2.astype(jnp.bfloat16), "b2": b2}


def reference_forward(x, a_norm, params, in_channels, out_channels, h_dtype=jnp.float32):
    """Pure-JAX reference mirroring the kernels' dtype policy (bf16 MXU, f32 accum).
    h_dtype=bf16 mirrors the tiled path's bf16 intermediate (stats stay f32)."""
    N = x.shape[0]
    Cp = params["w1"].shape[0] // 2
    Hp = params["w1"].shape[1]
    a = a_norm.astype(jnp.bfloat16)
    xp = jnp.zeros((N, Cp), jnp.bfloat16).at[:, :in_channels].set(x.astype(jnp.bfloat16))

    agg1 = jnp.dot(a, xp, preferred_element_type=jnp.float32)
    h = (jnp.dot(agg1.astype(jnp.bfloat16), params["w1"][:Cp], preferred_element_type=jnp.float32)
         + jnp.dot(xp, params["w1"][Cp:], preferred_element_type=jnp.float32)
         + params["b1"])

    mu = jnp.mean(h, axis=0, keepdims=True)
    var = jnp.mean((h - mu) ** 2, axis=0, keepdims=True)
    h = h.astype(h_dtype).astype(jnp.float32)
    hn = (h - mu) * jax.lax.rsqrt(var + _BN_EPS) * params["gamma"] + params["beta"]
    hn = jnp.maximum(hn, 0.0).astype(jnp.bfloat16)

    agg2 = jnp.dot(a, hn, preferred_element_type=jnp.float32)
    out = (jnp.dot(agg2.astype(jnp.bfloat16), params["w2"][:Hp], preferred_element_type=jnp.float32)
           + jnp.dot(hn, params["w2"][Hp:], preferred_element_type=jnp.float32)
           + params["b2"])
    return out[:, :out_channels]


if __name__ == "__main__":
    key = jax.random.PRNGKey(0)
    k_x, k_e, k_p, k_x2, k_e2 = jax.random.split(key, 5)

    in_channels, hidden_channels, out_channels = 16, 32, 8
    params = init_params(k_p, in_channels, hidden_channels, out_channels)

    # 1) small graph -> fully fused single-kernel path (A read once, no HBM round-trips)
    n1, e1 = 256, 1024
    x1 = jax.random.normal(k_x, (n1, in_channels), jnp.float32)
    ei1 = jax.random.randint(k_e, (2, e1), 0, n1, jnp.int32)
    a1 = build_normalized_adjacency(ei1, n1)
    out1 = jax.block_until_ready(graphsage_forward(x1, a1, params, out_channels))
    ref1 = reference_forward(x1, a1, params, in_channels, out_channels)
    assert out1.shape == (n1, out_channels)
    assert jnp.allclose(out1, ref1, atol=2e-3, rtol=2e-3)

    # 2) row-tiled large-graph code path (forced): padded N (not a multiple of the tile),
    #    bf16 h intermediate, per-tile BN partial sums, tiled BN+ReLU, conv2.
    n2, e2 = 200, 800
    x2 = jax.random.normal(k_x2, (n2, in_channels), jnp.float32)
    ei2 = jax.random.randint(k_e2, (2, e2), 0, n2, jnp.int32)
    a2 = build_normalized_adjacency(ei2, n2)
    out2 = jax.block_until_ready(
        graphsage_forward(x2, a2, params, out_channels, force_tiled=True, tm=128))
    ref2 = reference_forward(x2, a2, params, in_channels, out_channels, h_dtype=jnp.bfloat16)
    assert out2.shape == (n2, out_channels)
    assert jnp.allclose(out2, ref2, atol=2e-3, rtol=2e-3)

    print("KERNEL_OK")
</pallas_src>

<mosaic_0001>
module attributes {stable_mosaic.version = 11 : i64} {
  func.func @_fused_kernel(%arg0: memref<256x256xbf16, #tpu.memory_space<vmem>>, %arg1: memref<256x128xbf16, #tpu.memory_space<vmem>>, %arg2: memref<256x128xbf16, #tpu.memory_space<vmem>>, %arg3: memref<1x128xf32, #tpu.memory_space<vmem>>, %arg4: memref<1x128xf32, #tpu.memory_space<vmem>>, %arg5: memref<1x128xf32, #tpu.memory_space<vmem>>, %arg6: memref<256x128xbf16, #tpu.memory_space<vmem>>, %arg7: memref<1x128xf32, #tpu.memory_space<vmem>>, %arg8: memref<256x128xf32, #tpu.memory_space<vmem>>) attributes {dimension_semantics = [], scalar_prefetch = 0 : i64, scratch_operands = 0 : i64, tpu.core_type = #tpu.core_type<tc>} {
    %c0 = arith.constant 0 : index
    %c0_0 = arith.constant 0 : index
    %0 = vector.load %arg0[%c0, %c0_0] : memref<256x256xbf16, #tpu.memory_space<vmem>>, vector<256x256xbf16>
    %c0_1 = arith.constant 0 : index
    %c0_2 = arith.constant 0 : index
    %1 = vector.load %arg1[%c0_1, %c0_2] : memref<256x128xbf16, #tpu.memory_space<vmem>>, vector<256x128xbf16>
    %cst = arith.constant dense<0.000000e+00> : vector<256x128xf32>
    %2 = tpu.matmul %0, %1, %cst {dimension_numbers = #tpu.dot_dimension_numbers<[1], [0], [0], [1], [0, 0, 1, 1], [], []>} : vector<256x256xbf16>, vector<256x128xbf16>, vector<256x128xf32> -> vector<256x128xf32>
    %3 = arith.truncf %2 : vector<256x128xf32> to vector<256x128xbf16>
    %c0_3 = arith.constant 0 : index
    %c0_4 = arith.constant 0 : index
    %4 = vector.load %arg2[%c0_3, %c0_4] : memref<256x128xbf16, #tpu.memory_space<vmem>>, vector<128x128xbf16>
    %cst_5 = arith.constant dense<0.000000e+00> : vector<256x128xf32>
    %5 = tpu.matmul %3, %4, %cst_5 {dimension_numbers = #tpu.dot_dimension_numbers<[1], [0], [0], [1], [0, 0, 1, 1], [], []>} : vector<256x128xbf16>, vector<128x128xbf16>, vector<256x128xf32> -> vector<256x128xf32>
    %c128 = arith.constant 128 : index
    %c0_6 = arith.constant 0 : index
    %6 = vector.load %arg2[%c128, %c0_6] : memref<256x128xbf16, #tpu.memory_space<vmem>>, vector<128x128xbf16>
    %cst_7 = arith.constant dense<0.000000e+00> : vector<256x128xf32>
    %7 = tpu.matmul %1, %6, %cst_7 {dimension_numbers = #tpu.dot_dimension_numbers<[1], [0], [0], [1], [0, 0, 1, 1], [], []>} : vector<256x128xbf16>, vector<128x128xbf16>, vector<256x128xf32> -> vector<256x128xf32>
    %8 = arith.addf %5, %7 : vector<256x128xf32>
    %c0_8 = arith.constant 0 : index
    %c0_9 = arith.constant 0 : index
    %9 = vector.load %arg3[%c0_8, %c0_9] : memref<1x128xf32, #tpu.memory_space<vmem>>, vector<1x128xf32>
    %10 = vector.broadcast %9 : vector<1x128xf32> to vector<256x128xf32>
    %11 = arith.addf %8, %10 : vector<256x128xf32>
    %cst_10 = arith.constant dense<0.000000e+00> : vector<128xf32>
    %12 = vector.multi_reduction <add>, %11, %cst_10 [0] : vector<256x128xf32> to vector<128xf32>
    %13 = vector.shape_cast %12 : vector<128xf32> to vector<1x128xf32>
    %cst_11 = arith.constant 2.560000e+02 : f32
    %14 = vector.broadcast %cst_11 : f32 to vector<1x128xf32>
    %15 = arith.divf %13, %14 : vector<1x128xf32>
    %16 = vector.broadcast %15 : vector<1x128xf32> to vector<256x128xf32>
    %17 = arith.subf %11, %16 : vector<256x128xf32>
    %18 = vector.broadcast %15 : vector<1x128xf32> to vector<256x128xf32>
    %19 = arith.subf %11, %18 : vector<256x128xf32>
    %20 = arith.mulf %17, %19 : vector<256x128xf32>
    %cst_12 = arith.constant dense<0.000000e+00> : vector<128xf32>
    %21 = vector.multi_reduction <add>, %20, %cst_12 [0] : vector<256x128xf32> to vector<128xf32>
    %22 = vector.shape_cast %21 : vector<128xf32> to vector<1x128xf32>
    %cst_13 = arith.constant 2.560000e+02 : f32
    %23 = vector.broadcast %cst_13 : f32 to vector<1x128xf32>
    %24 = arith.divf %22, %23 : vector<1x128xf32>
    %25 = vector.broadcast %15 : vector<1x128xf32> to vector<256x128xf32>
    %26 = arith.subf %11, %25 : vector<256x128xf32>
    %cst_14 = arith.constant 9.99999974E-6 : f32
    %27 = vector.broadcast %cst_14 : f32 to vector<1x128xf32>
    %28 = arith.addf %24, %27 : vector<1x128xf32>
    %29 = math.rsqrt %28 : vector<1x128xf32>
    %30 = vector.broadcast %29 : vector<1x128xf32> to vector<256x128xf32>
    %31 = arith.mulf %26, %30 : vector<256x128xf32>
    %c0_15 = arith.constant 0 : index
    %c0_16 = arith.constant 0 : index
    %32 = vector.load %arg4[%c0_15, %c0_16] : memref<1x128xf32, #tpu.memory_space<vmem>>, vector<1x128xf32>
    %33 = vector.broadcast %32 : vector<1x128xf32> to vector<256x128xf32>
    %34 = arith.mulf %31, %33 : vector<256x128xf32>
    %c0_17 = arith.constant 0 : index
    %c0_18 = arith.constant 0 : index
    %35 = vector.load %arg5[%c0_17, %c0_18] : memref<1x128xf32, #tpu.memory_space<vmem>>, vector<1x128xf32>
    %36 = vector.broadcast %35 : vector<1x128xf32> to vector<256x128xf32>
    %37 = arith.addf %34, %36 : vector<256x128xf32>
    %cst_19 = arith.constant 0.000000e+00 : f32
    %38 = vector.broadcast %cst_19 : f32 to vector<256x128xf32>
    %39 = arith.maximumf %37, %38 : vector<256x128xf32>
    %40 = arith.truncf %39 : vector<256x128xf32> to vector<256x128xbf16>
    %cst_20 = arith.constant dense<0.000000e+00> : vector<256x128xf32>
    %41 = tpu.matmul %0, %40, %cst_20 {dimension_numbers = #tpu.dot_dimension_numbers<[1], [0], [0], [1], [0, 0, 1, 1], [], []>} : vector<256x256xbf16>, vector<256x128xbf16>, vector<256x128xf32> -> vector<256x128xf32>
    %42 = arith.truncf %41 : vector<256x128xf32> to vector<256x128xbf16>
    %c0_21 = arith.constant 0 : index
    %c0_22 = arith.constant 0 : index
    %43 = vector.load %arg6[%c0_21, %c0_22] : memref<256x128xbf16, #tpu.memory_space<vmem>>, vector<128x128xbf16>
    %cst_23 = arith.constant dense<0.000000e+00> : vector<256x128xf32>
    %44 = tpu.matmul %42, %43, %cst_23 {dimension_numbers = #tpu.dot_dimension_numbers<[1], [0], [0], [1], [0, 0, 1, 1], [], []>} : vector<256x128xbf16>, vector<128x128xbf16>, vector<256x128xf32> -> vector<256x128xf32>
    %c128_24 = arith.constant 128 : index
    %c0_25 = arith.constant 0 : index
    %45 = vector.load %arg6[%c128_24, %c0_25] : memref<256x128xbf16, #tpu.memory_space<vmem>>, vector<128x128xbf16>
    %cst_26 = arith.constant dense<0.000000e+00> : vector<256x128xf32>
    %46 = tpu.matmul %40, %45, %cst_26 {dimension_numbers = #tpu.dot_dimension_numbers<[1], [0], [0], [1], [0, 0, 1, 1], [], []>} : vector<256x128xbf16>, vector<128x128xbf16>, vector<256x128xf32> -> vector<256x128xf32>
    %47 = arith.addf %44, %46 : vector<256x128xf32>
    %c0_27 = arith.constant 0 : index
    %c0_28 = arith.constant 0 : index
    %48 = vector.load %arg7[%c0_27, %c0_28] : memref<1x128xf32, #tpu.memory_space<vmem>>, vector<1x128xf32>
    %49 = vector.broadcast %48 : vector<1x128xf32> to vector<256x128xf32>
    %50 = arith.addf %47, %49 : vector<256x128xf32>
    %c0_29 = arith.constant 0 : index
    %c0_30 = arith.constant 0 : index
    %51 = vector.load %arg8[%c0_29, %c0_30] : memref<256x128xf32, #tpu.memory_space<vmem>>, vector<256x128xf32>
    tpu.vector_store %arg8[%c0_29, %c0_30], %50 {strides = array<i32>} : memref<256x128xf32, #tpu.memory_space<vmem>>, vector<256x128xf32>,
    return
  }
}

</mosaic_0001>

<llo_original>
// kernel: tpu_custom_call.1
$region0: #{tpu_custom_call.1}
  #allocation0 [shape = 'u32[]', space=smem, size = 0x4, offset = 0x4, fixed_abs, tag = 'smem constant byte address 0x4 - core index']
  #allocation1 [shape = 'u32[144,128]{1,0:T(1,128)}', space=vmem, size = 0x12000, scoped, tag = 'internal scratch']
  %s0 = inlined_call_operand.hbm [shape: bf16[256,256], index: 0, kind: input, shape index: {}]
  %s1 = inlined_call_operand.hbm [shape: bf16[256,128], index: 1, kind: input, shape index: {}]
  %s2 = inlined_call_operand.hbm [shape: bf16[256,128], index: 2, kind: input, shape index: {}]
  %s3 = inlined_call_operand.vmem [shape: f32[1,128], index: 3, kind: input, shape index: {}]
  %s4 = inlined_call_operand.vmem [shape: f32[1,128], index: 4, kind: input, shape index: {}]
  %s5 = inlined_call_operand.vmem [shape: f32[1,128], index: 5, kind: input, shape index: {}]
  %s6 = inlined_call_operand.hbm [shape: bf16[256,128], index: 6, kind: input, shape index: {}]
  %s7 = inlined_call_operand.vmem [shape: f32[1,128], index: 7, kind: input, shape index: {}]
  %s8 = inlined_call_operand.hbm [shape: f32[256,128], index: 8, kind: output, shape index: {}]
  %s9 = sld [smem:[#allocation0]]
  $region58: #{tpu_custom_call.1} parent=0
    _
  %s11 = ssub.s32 1, %s9
  %s12 = scalar_select 0, %s11, %s9
  $region1: #{tpu_custom_call.1} parent=0
    #allocation2 [shape = 'u8[131072]{0}', space=vmem, size = 0x20000, scoped, tag = 'input window, operand 0, single buffered']
    #allocation3 [shape = 's32[1]{0}', space=sflag, size = 0x4, scoped, tag = 'scoped memory for tpu_custom_call.1']
    #allocation4 [shape = 's32[1]{0}', space=sflag, size = 0x4, scoped, tag = 'scoped memory for tpu_custom_call.1']
    #allocation5 [shape = 'u8[65536]{0}', space=vmem, size = 0x10000, scoped, tag = 'input window, operand 1, single buffered']
    #allocation6 [shape = 's32[1]{0}', space=sflag, size = 0x4, scoped, tag = 'scoped memory for tpu_custom_call.1']
    #allocation7 [shape = 'u8[65536]{0}', space=vmem, size = 0x10000, scoped, tag = 'input window, operand 2, single buffered']
    #allocation8 [shape = 'u8[65536]{0}', space=vmem, size = 0x10000, scoped, tag = 'input window, operand 6, single buffered']
    #allocation9 [shape = 's32[1]{0}', space=sflag, size = 0x4, scoped, tag = 'scoped memory for tpu_custom_call.1']
    #allocation10 [shape = 'u8[131072]{0}', space=vmem, size = 0x20000, scoped, tag = 'output window, operand 0, single buffered']
    %13 = vsyncpa [#allocation3], 0
    %14 = vsyncpa [#allocation6], 0
    %15 = vsyncpa [#allocation9], 0
    %16 = vsyncpa [#allocation4], 0
    // Predicated region
    $region2: #{tpu_custom_call.1} parent=1 // pred_check
      _
    $region3: #{tpu_custom_call.1} parent=1 // pred_check_branch
      %18 = sbr.rel (0) target = $region5
    $region4: #{tpu_custom_call.1} parent=1 // pred_region
      %s20 = ssub.s32 4096, 4096
      %21 = vsyncadd [#allocation3], %s20
      %s22 = sshll.u32 [#allocation2], 4
      %s23 = int_to_ptr.vmem [resolvable:$true] %s22
      %28 = dma.hbm_to_vmem [thread:$0]  %s0, 4096, %s23, [#allocation3], 128, 128, 8
    $region5: #{tpu_custom_call.1} parent=1 // pred_fallthru
      _
    // Predicated region
    $region6: #{tpu_custom_call.1} parent=1 // pred_check
      _
    $region7: #{tpu_custom_call.1} parent=1 // pred_check_branch
      %30 = sbr.rel (0) target = $region9
    $region8: #{tpu_custom_call.1} parent=1 // pred_region
      %s32 = ssub.s32 2048, 2048
      %33 = vsyncadd [#allocation6], %s32
      %s34 = sshll.u32 [#allocation5], 4
      %s35 = int_to_ptr.vmem [resolvable:$true] %s34
      %40 = dma.hbm_to_vmem [thread:$0]  %s1, 2048, %s35, [#allocation6], 64, 64, 4
    $region9: #{tpu_custom_call.1} parent=1 // pred_fallthru
      _
    // Predicated region
    $region10: #{tpu_custom_call.1} parent=1 // pred_check
      _
    $region11: #{tpu_custom_call.1} parent=1 // pred_check_branch
      %42 = sbr.rel (0) target = $region13
    $region12: #{tpu_custom_call.1} parent=1 // pred_region
      %s44 = ssub.s32 2048, 2048
      %45 = vsyncadd [#allocation6], %s44
      %s46 = sshll.u32 [#allocation7], 4
      %s47 = int_to_ptr.vmem [resolvable:$true] %s46
      %52 = dma.hbm_to_vmem [thread:$0]  %s2, 2048, %s47, [#allocation6], 64, 64, 4
    $region13: #{tpu_custom_call.1} parent=1 // pred_fallthru
      _
    // Predicated region
    $region14: #{tpu_custom_call.1} parent=1 // pred_check
      _
    $region15: #{tpu_custom_call.1} parent=1 // pred_check_branch
      %54 = sbr.rel (0) target = $region17
    $region16: #{tpu_custom_call.1} parent=1 // pred_region
      _
    $region17: #{tpu_custom_call.1} parent=1 // pred_fallthru
      _
    // Predicated region
    $region18: #{tpu_custom_call.1} parent=1 // pred_check
      _
    $region19: #{tpu_custom_call.1} parent=1 // pred_check_branch
      %56 = sbr.rel (0) target = $region21
    $region20: #{tpu_custom_call.1} parent=1 // pred_region
      _
    $region21: #{tpu_custom_call.1} parent=1 // pred_fallthru
      _
    // Predicated region
    $region22: #{tpu_custom_call.1} parent=1 // pred_check
      _
    $region23: #{tpu_custom_call.1} parent=1 // pred_check_branch
      %58 = sbr.rel (0) target = $region25
    $region24: #{tpu_custom_call.1} parent=1 // pred_region
      _
    $region25: #{tpu_custom_call.1} parent=1 // pred_fallthru
      _
    // Predicated region
    $region26: #{tpu_custom_call.1} parent=1 // pred_check
      _
    $region27: #{tpu_custom_call.1} parent=1 // pred_check_branch
      %60 = sbr.rel (0) target = $region29
    $region28: #{tpu_custom_call.1} parent=1 // pred_region
      %s62 = ssub.s32 2048, 2048
      %63 = vsyncadd [#allocation9], %s62
      %s64 = sshll.u32 [#allocation8], 4
      %s65 = int_to_ptr.vmem [resolvable:$true] %s64
      %70 = dma.hbm_to_vmem [thread:$0]  %s6, 2048, %s65, [#allocation9], 64, 64, 4
    $region29: #{tpu_custom_call.1} parent=1 // pred_fallthru
      _
    // Predicated region
    $region30: #{tpu_custom_call.1} parent=1 // pred_check
      _
    $region31: #{tpu_custom_call.1} parent=1 // pred_check_branch
      %72 = sbr.rel (0) target = $region33
    $region32: #{tpu_custom_call.1} parent=1 // pred_region
      _
    $region33: #{tpu_custom_call.1} parent=1 // pred_fallthru
      _
    // Predicated region
    $region34: #{tpu_custom_call.1} parent=1 // pred_check
      _
    $region35: #{tpu_custom_call.1} parent=1 // pred_check_branch
      %74 = sbr.rel (0) target = $region37
    $region36: #{tpu_custom_call.1} parent=1 // pred_region
      %75 = dma.done [#allocation3], 4096
    $region37: #{tpu_custom_call.1} parent=1 // pred_fallthru
      _
    // Predicated region
    $region38: #{tpu_custom_call.1} parent=1 // pred_check
      _
    $region39: #{tpu_custom_call.1} parent=1 // pred_check_branch
      %77 = sbr.rel (0) target = $region41
    $region40: #{tpu_custom_call.1} parent=1 // pred_region
      %78 = dma.done [#allocation6], 2048
    $region41: #{tpu_custom_call.1} parent=1 // pred_fallthru
      _
    // Predicated region
    $region42: #{tpu_custom_call.1} parent=1 // pred_check
      _
    $region43: #{tpu_custom_call.1} parent=1 // pred_check_branch
      %80 = sbr.rel (0) target = $region45
    $region44: #{tpu_custom_call.1} parent=1 // pred_region
      %81 = dma.done [#allocation6], 2048
    $region45: #{tpu_custom_call.1} parent=1 // pred_fallthru
      _
    // Predicated region
    $region46: #{tpu_custom_call.1} parent=1 // pred_check
      _
    $region47: #{tpu_custom_call.1} parent=1 // pred_check_branch
      %83 = sbr.rel (0) target = $region49
    $region48: #{tpu_custom_call.1} parent=1 // pred_region
      %84 = dma.done [#allocation9], 2048
    $region49: #{tpu_custom_call.1} parent=1 // pred_fallthru
      _
    %v86 = vld [vmem:[#allocation2] sm:$0xff]
    %v87 = vld [vmem:[#allocation2 + $0x8] sm:$0xff]
    %v88 = vld [vmem:[#allocation2 + $0x10] sm:$0xff]
    %v89 = vld [vmem:[#allocation2 + $0x18] sm:$0xff]
    %v90 = vld [vmem:[#allocation2 + $0x20] sm:$0xff]
    %v91 = vld [vmem:[#allocation2 + $0x28] sm:$0xff]
    %v92 = vld [vmem:[#allocation2 + $0x30] sm:$0xff]
    %v93 = vld [vmem:[#allocation2 + $0x38] sm:$0xff]
    %v94 = vld [vmem:[#allocation2 + $0x40] sm:$0xff]
    %v95 = vld [vmem:[#allocation2 + $0x48] sm:$0xff]
    %v96 = vld [vmem:[#allocation2 + $0x50] sm:$0xff]
    %v97 = vld [vmem:[#allocation2 + $0x58] sm:$0xff]
    %v98 = vld [vmem:[#allocation2 + $0x60] sm:$0xff]
    %v99 = vld [vmem:[#allocation2 + $0x68] sm:$0xff]
    %v100 = vld [vmem:[#allocation2 + $0x70] sm:$0xff]
    %v101 = vld [vmem:[#allocation2 + $0x78] sm:$0xff]
    %v102 = vld [vmem:[#allocation2 + $0x80] sm:$0xff]
    %v103 = vld [vmem:[#allocation2 + $0x88] sm:$0xff]
    %v104 = vld [vmem:[#allocation2 + $0x90] sm:$0xff]
    %v105 = vld [vmem:[#allocation2 + $0x98] sm:$0xff]
    %v106 = vld [vmem:[#allocation2 + $0xa0] sm:$0xff]
    %v107 = vld [vmem:[#allocation2 + $0xa8] sm:$0xff]
    %v108 = vld [vmem:[#allocation2 + $0xb0] sm:$0xff]
    %v109 = vld [vmem:[#allocation2 + $0xb8] sm:$0xff]
    %v110 = vld [vmem:[#allocation2 + $0xc0] sm:$0xff]
    %v111 = vld [vmem:[#allocation2 + $0xc8] sm:$0xff]
    %v112 = vld [vmem:[#allocation2 + $0xd0] sm:$0xff]
    %v113 = vld [vmem:[#allocation2 + $0xd8] sm:$0xff]
    %v114 = vld [vmem:[#allocation2 + $0xe0] sm:$0xff]
    %v115 = vld [vmem:[#allocation2 + $0xe8] sm:$0xff]
    %v116 = vld [vmem:[#allocation2 + $0xf0] sm:$0xff]
    %v117 = vld [vmem:[#allocation2 + $0xf8] sm:$0xff]
    %v118 = vld [vmem:[#allocation5] sm:$0xf]
    %v119 = vld [vmem:[#allocation5 + $0x4] sm:$0xf]
    %v120 = vld [vmem:[#allocation5 + $0x8] sm:$0xf]
    %v121 = vld [vmem:[#allocation5 + $0xc] sm:$0xf]
    %v122 = vld [vmem:[#allocation5 + $0x10] sm:$0xf]
    %v123 = vld [vmem:[#allocation5 + $0x14] sm:$0xf]
    %v124 = vld [vmem:[#allocation5 + $0x18] sm:$0xf]
    %v125 = vld [vmem:[#allocation5 + $0x1c] sm:$0xf]
    %v126 = vld [vmem:[#allocation5 + $0x20] sm:$0xf]
    %v127 = vld [vmem:[#allocation5 + $0x24] sm:$0xf]
    %v128 = vld [vmem:[#allocation5 + $0x28] sm:$0xf]
    %v129 = vld [vmem:[#allocation5 + $0x2c] sm:$0xf]
    %v130 = vld [vmem:[#allocation5 + $0x30] sm:$0xf]
    %v131 = vld [vmem:[#allocation5 + $0x34] sm:$0xf]
    %v132 = vld [vmem:[#allocation5 + $0x38] sm:$0xf]
    %v133 = vld [vmem:[#allocation5 + $0x3c] sm:$0xf]
    %v134 = vld [vmem:[#allocation5 + $0x40] sm:$0xf]
    %v135 = vld [vmem:[#allocation5 + $0x44] sm:$0xf]
    %v136 = vld [vmem:[#allocation5 + $0x48] sm:$0xf]
    %v137 = vld [vmem:[#allocation5 + $0x4c] sm:$0xf]
    %v138 = vld [vmem:[#allocation5 + $0x50] sm:$0xf]
    %v139 = vld [vmem:[#allocation5 + $0x54] sm:$0xf]
    %v140 = vld [vmem:[#allocation5 + $0x58] sm:$0xf]
    %v141 = vld [vmem:[#allocation5 + $0x5c] sm:$0xf]
    %v142 = vld [vmem:[#allocation5 + $0x60] sm:$0xf]
    %v143 = vld [vmem:[#allocation5 + $0x64] sm:$0xf]
    %v144 = vld [vmem:[#allocation5 + $0x68] sm:$0xf]
    %v145 = vld [vmem:[#allocation5 + $0x6c] sm:$0xf]
    %v146 = vld [vmem:[#allocation5 + $0x70] sm:$0xf]
    %v147 = vld [vmem:[#allocation5 + $0x74] sm:$0xf]
    %v148 = vld [vmem:[#allocation5 + $0x78] sm:$0xf]
    %v149 = vld [vmem:[#allocation5 + $0x7c] sm:$0xf]
    %v182 = vunpack.c.l.b16 %v86
    %v183 = vunpack.c.h.b16 %v86
    %v184 = vunpack.c.l.b16 %v87
    %v185 = vunpack.c.h.b16 %v87
    %v186 = vunpack.c.l.b16 %v88
    %v187 = vunpack.c.h.b16 %v88
    %v188 = vunpack.c.l.b16 %v89
    %v189 = vunpack.c.h.b16 %v89
    %v190 = vunpack.c.l.b16 %v90
    %v191 = vunpack.c.h.b16 %v90
    %v192 = vunpack.c.l.b16 %v91
    %v193 = vunpack.c.h.b16 %v91
    %v194 = vunpack.c.l.b16 %v92
    %v195 = vunpack.c.h.b16 %v92
    %v196 = vunpack.c.l.b16 %v93
    %v197 = vunpack.c.h.b16 %v93
    %v198 = vunpack.c.l.b16 %v94
    %v199 = vunpack.c.h.b16 %v94
    %v200 = vunpack.c.l.b16 %v95
    %v201 = vunpack.c.h.b16 %v95
    %v202 = vunpack.c.l.b16 %v96
    %v203 = vunpack.c.h.b16 %v96
    %v204 = vunpack.c.l.b16 %v97
    %v205 = vunpack.c.h.b16 %v97
    %v206 = vunpack.c.l.b16 %v98
    %v207 = vunpack.c.h.b16 %v98
    %v208 = vunpack.c.l.b16 %v99
    %v209 = vunpack.c.h.b16 %v99
    %v210 = vunpack.c.l.b16 %v100
    %v211 = vunpack.c.h.b16 %v100
    %v212 = vunpack.c.l.b16 %v101
    %v213 = vunpack.c.h.b16 %v101
    %v214 = vunpack.c.l.b16 %v102
    %v215 = vunpack.c.h.b16 %v102
    %v216 = vunpack.c.l.b16 %v103
    %v217 = vunpack.c.h.b16 %v103
    %v218 = vunpack.c.l.b16 %v104
    %v219 = vunpack.c.h.b16 %v104
    %v220 = vunpack.c.l.b16 %v105
    %v221 = vunpack.c.h.b16 %v105
    %v222 = vunpack.c.l.b16 %v106
    %v223 = vunpack.c.h.b16 %v106
    %v224 = vunpack.c.l.b16 %v107
    %v225 = vunpack.c.h.b16 %v107
    %v226 = vunpack.c.l.b16 %v108
    %v227 = vunpack.c.h.b16 %v108
    %v228 = vunpack.c.l.b16 %v109
    %v229 = vunpack.c.h.b16 %v109
    %v230 = vunpack.c.l.b16 %v110
    %v231 = vunpack.c.h.b16 %v110
    %v232 = vunpack.c.l.b16 %v111
    %v233 = vunpack.c.h.b16 %v111
    %v234 = vunpack.c.l.b16 %v112
    %v235 = vunpack.c.h.b16 %v112
    %v236 = vunpack.c.l.b16 %v113
    %v237 = vunpack.c.h.b16 %v113
    %v238 = vunpack.c.l.b16 %v114
    %v239 = vunpack.c.h.b16 %v114
    %v240 = vunpack.c.l.b16 %v115
    %v241 = vunpack.c.h.b16 %v115
    %v242 = vunpack.c.l.b16 %v116
    %v243 = vunpack.c.h.b16 %v116
    %v244 = vunpack.c.l.b16 %v117
    %v245 = vunpack.c.h.b16 %v117
    %v246 = vpack.c.b16 %v184, %v182
    %v247 = vpack.c.b16 %v185, %v183
    %v248 = vpack.c.b16 %v188, %v186
    %v249 = vpack.c.b16 %v189, %v187
    %v250 = vpack.c.b16 %v192, %v190
    %v251 = vpack.c.b16 %v193, %v191
    %v252 = vpack.c.b16 %v196, %v194
    %v253 = vpack.c.b16 %v197, %v195
    %v254 = vpack.c.b16 %v200, %v198
    %v255 = vpack.c.b16 %v201, %v199
    %v256 = vpack.c.b16 %v204, %v202
    %v257 = vpack.c.b16 %v205, %v203
    %v258 = vpack.c.b16 %v208, %v206
    %v259 = vpack.c.b16 %v209, %v207
    %v260 = vpack.c.b16 %v212, %v210
    %v261 = vpack.c.b16 %v213, %v211
    %v262 = vpack.c.b16 %v216, %v214
    %v263 = vpack.c.b16 %v217, %v215
    %v264 = vpack.c.b16 %v220, %v218
    %v265 = vpack.c.b16 %v221, %v219
    %v266 = vpack.c.b16 %v224, %v222
    %v267 = vpack.c.b16 %v225, %v223
    %v268 = vpack.c.b16 %v228, %v226
    %v269 = vpack.c.b16 %v229, %v227
    %v270 = vpack.c.b16 %v232, %v230
    %v271 = vpack.c.b16 %v233, %v231
    %v272 = vpack.c.b16 %v236, %v234
    %v273 = vpack.c.b16 %v237, %v235
    %v274 = vpack.c.b16 %v240, %v238
    %v275 = vpack.c.b16 %v241, %v239
    %v276 = vpack.c.b16 %v244, %v242
    %v277 = vpack.c.b16 %v245, %v243
    %v342 = vunpack.c.l.b16 %v118
    %v343 = vunpack.c.l.b16 %v119
    %v344 = vunpack.c.l.b16 %v120
    %v345 = vunpack.c.l.b16 %v121
    %v346 = vunpack.c.l.b16 %v122
    %v347 = vunpack.c.l.b16 %v123
    %v348 = vunpack.c.l.b16 %v124
    %v349 = vunpack.c.l.b16 %v125
    %v350 = vunpack.c.l.b16 %v126
    %v351 = vunpack.c.l.b16 %v127
    %v352 = vunpack.c.l.b16 %v128
    %v353 = vunpack.c.l.b16 %v129
    %v354 = vunpack.c.l.b16 %v130
    %v355 = vunpack.c.l.b16 %v131
    %v356 = vunpack.c.l.b16 %v132
    %v357 = vunpack.c.l.b16 %v133
    %v358 = vunpack.c.l.b16 %v134
    %v359 = vunpack.c.l.b16 %v135
    %v360 = vunpack.c.l.b16 %v136
    %v361 = vunpack.c.l.b16 %v137
    %v362 = vunpack.c.l.b16 %v138
    %v363 = vunpack.c.l.b16 %v139
    %v364 = vunpack.c.l.b16 %v140
    %v365 = vunpack.c.l.b16 %v141
    %v366 = vunpack.c.l.b16 %v142
    %v367 = vunpack.c.l.b16 %v143
    %v368 = vunpack.c.l.b16 %v144
    %v369 = vunpack.c.l.b16 %v145
    %v370 = vunpack.c.l.b16 %v146
    %v371 = vunpack.c.l.b16 %v147
    %v372 = vunpack.c.l.b16 %v148
    %v373 = vunpack.c.l.b16 %v149
    %v374 = vpack.c.b16 %v343, %v342
    %v375 = vpack.c.b16 %v345, %v344
    %v376 = vpack.c.b16 %v347, %v346
    %v377 = vpack.c.b16 %v349, %v348
    %v378 = vpack.c.b16 %v351, %v350
    %v379 = vpack.c.b16 %v353, %v352
    %v380 = vpack.c.b16 %v355, %v354
    %v381 = vpack.c.b16 %v357, %v356
    %v382 = vpack.c.b16 %v359, %v358
    %v383 = vpack.c.b16 %v361, %v360
    %v384 = vpack.c.b16 %v363, %v362
    %v385 = vpack.c.b16 %v365, %v364
    %v386 = vpack.c.b16 %v367, %v366
    %v387 = vpack.c.b16 %v369, %v368
    %v388 = vpack.c.b16 %v371, %v370
    %v389 = vpack.c.b16 %v373, %v372
    %406 = vmatprep.subr.bf16.mxu0 0
    %407 = vmatpush1.bf16.msra.mxu0 %v374
    %408 = vmatprep.subr.bf16.mxu0 0
    %409 = vmatpush1.bf16.msra.mxu0 %v375
    %410 = vmatprep.subr.bf16.mxu0 0
    %411 = vmatpush1.bf16.msra.mxu0 %v376
    %412 = vmatprep.subr.bf16.mxu0 0
    %413 = vmatpush1.bf16.msra.mxu0 %v377
    %414 = vmatprep.subr.bf16.mxu0 0
    %415 = vmatpush1.bf16.msra.mxu0 %v378
    %416 = vmatprep.subr.bf16.mxu0 0
    %417 = vmatpush1.bf16.msra.mxu0 %v379
    %418 = vmatprep.subr.bf16.mxu0 0
    %419 = vmatpush1.bf16.msra.mxu0 %v380
    %420 = vmatprep.subr.bf16.mxu0 0
    %421 = vmatpush1.bf16.msra.mxu0 %v381
    %422 = vmatprep.subr.bf16.mxu0 0
    %423 = vmatpush1.bf16.msra.mxu0 %v382
    %424 = vmatprep.subr.bf16.mxu0 0
    %425 = vmatpush1.bf16.msra.mxu0 %v383
    %426 = vmatprep.subr.bf16.mxu0 0
    %427 = vmatpush1.bf16.msra.mxu0 %v384
    %428 = vmatprep.subr.bf16.mxu0 0
    %429 = vmatpush1.bf16.msra.mxu0 %v385
    %430 = vmatprep.subr.bf16.mxu0 0
    %431 = vmatpush1.bf16.msra.mxu0 %v386
    %432 = vmatprep.subr.bf16.mxu0 0
    %433 = vmatpush1.bf16.msra.mxu0 %v387
    %434 = vmatprep.subr.bf16.mxu0 0
    %435 = vmatpush1.bf16.msra.mxu0 %v388
    %436 = vmatprep.subr.bf16.mxu0 0
    %437 = vmatpush1.bf16.msra.mxu0 %v389
    %438 = vmatprep.mubr.bf16.mxu0 %v247
    %439 = vmatmul.mubr.bf16.gmra.mrb[0].mxu0 %v246
    %v440 = vpop.f32.mrb[0].mxu0
    %v441 = vadd.f32 0.0, %v440
    %v442 = vpop.f32.mrb[0].mxu0
    %v443 = vpop.f32.mrb[0].mxu0
    %v444 = vadd.f32 0.0, %v443
    %v445 = vpop.f32.mrb[0].mxu0
    %446 = vmatprep.mubr.bf16.mxu0 %v249
    %447 = vmatmul.mubr.bf16.gmra.mrb[0].mxu0 %v248
    %v448 = vpop.f32.mrb[0].mxu0
    %v449 = vadd.f32 0.0, %v448
    %v450 = vpop.f32.mrb[0].mxu0
    %v451 = vpop.f32.mrb[0].mxu0
    %v452 = vadd.f32 0.0, %v451
    %v453 = vpop.f32.mrb[0].mxu0
    %454 = vmatprep.mubr.bf16.mxu0 %v251
    %455 = vmatmul.mubr.bf16.gmra.mrb[0].mxu0 %v250
    %v456 = vpop.f32.mrb[0].mxu0
    %v457 = vadd.f32 0.0, %v456
    %v458 = vpop.f32.mrb[0].mxu0
    %v459 = vpop.f32.mrb[0].mxu0
    %v460 = vadd.f32 0.0, %v459
    %v461 = vpop.f32.mrb[0].mxu0
    %462 = vmatprep.mubr.bf16.mxu0 %v253
    %463 = vmatmul.mubr.bf16.gmra.mrb[0].mxu0 %v252
    %v464 = vpop.f32.mrb[0].mxu0
    %v465 = vadd.f32 0.0, %v464
    %v466 = vpop.f32.mrb[0].mxu0
    %v467 = vpop.f32.mrb[0].mxu0
    %v468 = vadd.f32 0.0, %v467
    %v469 = vpop.f32.mrb[0].mxu0
    %470 = vmatprep.mubr.bf16.mxu0 %v255
    %471 = vmatmul.mubr.bf16.gmra.mrb[0].mxu0 %v254
    %v472 = vpop.f32.mrb[0].mxu0
    %v473 = vadd.f32 0.0, %v472
    %v474 = vpop.f32.mrb[0].mxu0
    %v475 = vpop.f32.mrb[0].mxu0
    %v476 = vadd.f32 0.0, %v475
    %v477 = vpop.f32.mrb[0].mxu0
    %478 = vmatprep.mubr.bf16.mxu0 %v257
    %479 = vmatmul.mubr.bf16.gmra.mrb[0].mxu0 %v256
    %v480 = vpop.f32.mrb[0].mxu0
    %v481 = vadd.f32 0.0, %v480
    %v482 = vpop.f32.mrb[0].mxu0
    %v483 = vpop.f32.mrb[0].mxu0
    %v484 = vadd.f32 0.0, %v483
    %v485 = vpop.f32.mrb[0].mxu0
    %486 = vmatprep.mubr.bf16.mxu0 %v259
    %487 = vmatmul.mubr.bf16.gmra.mrb[0].mxu0 %v258
    %v488 = vpop.f32.mrb[0].mxu0
    %v489 = vadd.f32 0.0, %v488
    %v490 = vpop.f32.mrb[0].mxu0
    %v491 = vpop.f32.mrb[0].mxu0
    %v492 = vadd.f32 0.0, %v491
    %v493 = vpop.f32.mrb[0].mxu0
    %494 = vmatprep.mubr.bf16.mxu0 %v261
    %495 = vmatmul.mubr.bf16.gmra.mrb[0].mxu0 %v260
    %v496 = vpop.f32.mrb[0].mxu0
    %v497 = vadd.f32 0.0, %v496
    %v498 = vpop.f32.mrb[0].mxu0
    %v499 = vpop.f32.mrb[0].mxu0
    %v500 = vadd.f32 0.0, %v499
    %v501 = vpop.f32.mrb[0].mxu0
    %502 = vmatprep.mubr.bf16.mxu0 %v263
    %503 = vmatmul.mubr.bf16.gmra.mrb[0].mxu0 %v262
    %v504 = vpop.f32.mrb[0].mxu0
    %v505 = vadd.f32 0.0, %v504
    %v506 = vpop.f32.mrb[0].mxu0
    %v507 = vpop.f32.mrb[0].mxu0
    %v508 = vadd.f32 0.0, %v507
    %v509 = vpop.f32.mrb[0].mxu0
    %510 = vmatprep.mubr.bf16.mxu0 %v265
    %511 = vmatmul.mubr.bf16.gmra.mrb[0].mxu0 %v264
    %v512 = vpop.f32.mrb[0].mxu0
    %v513 = vadd.f32 0.0, %v512
    %v514 = vpop.f32.mrb[0].mxu0
    %v515 = vpop.f32.mrb[0].mxu0
    %v516 = vadd.f32 0.0, %v515
    %v517 = vpop.f32.mrb[0].mxu0
    %518 = vmatprep.mubr.bf16.mxu0 %v267
    %519 = vmatmul.mubr.bf16.gmra.mrb[0].mxu0 %v266
    %v520 = vpop.f32.mrb[0].mxu0
    %v521 = vadd.f32 0.0, %v520
    %v522 = vpop.f32.mrb[0].mxu0
    %v523 = vpop.f32.mrb[0].mxu0
    %v524 = vadd.f32 0.0, %v523
    %v525 = vpop.f32.mrb[0].mxu0
    %526 = vmatprep.mubr.bf16.mxu0 %v269
    %527 = vmatmul.mubr.bf16.gmra.mrb[0].mxu0 %v268
    %v528 = vpop.f32.mrb[0].mxu0
    %v529 = vadd.f32 0.0, %v528
    %v530 = vpop.f32.mrb[0].mxu0
    %v531 = vpop.f32.mrb[0].mxu0
    %v532 = vadd.f32 0.0, %v531
    %v533 = vpop.f32.mrb[0].mxu0
    %534 = vmatprep.mubr.bf16.mxu0 %v271
    %535 = vmatmul.mubr.bf16.gmra.mrb[0].mxu0 %v270
    %v536 = vpop.f32.mrb[0].mxu0
    %v537 = vadd.f32 0.0, %v536
    %v538 = vpop.f32.mrb[0].mxu0
    %v539 = vpop.f32.mrb[0].mxu0
    %v540 = vadd.f32 0.0, %v539
    %v541 = vpop.f32.mrb[0].mxu0
    %542 = vmatprep.mubr.bf16.mxu0 %v273
    %543 = vmatmul.mubr.bf16.gmra.mrb[0].mxu0 %v272
    %v544 = vpop.f32.mrb[0].mxu0
    %v545 = vadd.f32 0.0, %v544
    %v546 = vpop.f32.mrb[0].mxu0
    %v547 = vpop.f32.mrb[0].mxu0
    %v548 = vadd.f32 0.0, %v547
    %v549 = vpop.f32.mrb[0].mxu0
    %550 = vmatprep.mubr.bf16.mxu0 %v275
    %551 = vmatmul.mubr.bf16.gmra.mrb[0].mxu0 %v274
    %v552 = vpop.f32.mrb[0].mxu0
    %v553 = vadd.f32 0.0, %v552
    %v554 = vpop.f32.mrb[0].mxu0
    %v555 = vpop.f32.mrb[0].mxu0
    %v556 = vadd.f32 0.0, %v555
    %v557 = vpop.f32.mrb[0].mxu0
    %558 = vmatprep.mubr.bf16.mxu0 %v277
    %559 = vmatmul.mubr.bf16.gmra.mrb[0].mxu0 %v276
    %v560 = vpop.f32.mrb[0].mxu0
    %v561 = vadd.f32 0.0, %v560
    %v562 = vpop.f32.mrb[0].mxu0
    %v563 = vpop.f32.mrb[0].mxu0
    %v564 = vadd.f32 0.0, %v563
    %v565 = vpop.f32.mrb[0].mxu0
    %566 = vdwg.mxu0
    %v567 = vpack.c.bf16 %v444, %v441
    %v568 = vpack.c.bf16 %v452, %v449
    %v569 = vpack.c.bf16 %v460, %v457
    %v570 = vpack.c.bf16 %v468, %v465
    %v571 = vpack.c.bf16 %v476, %v473
    %v572 = vpack.c.bf16 %v484, %v481
    %v573 = vpack.c.bf16 %v492, %v489
    %v574 = vpack.c.bf16 %v500, %v497
    %v575 = vpack.c.bf16 %v508, %v505
    %v576 = vpack.c.bf16 %v516, %v513
    %v577 = vpack.c.bf16 %v524, %v521
    %v578 = vpack.c.bf16 %v532, %v529
    %v579 = vpack.c.bf16 %v540, %v537
    %v580 = vpack.c.bf16 %v548, %v545
    %v581 = vpack.c.bf16 %v556, %v553
    %v582 = vpack.c.bf16 %v564, %v561
    %v583 = vld [vmem:[#allocation7] sm:$0xf]
    %v584 = vld [vmem:[#allocation7 + $0x4] sm:$0xf]
    %v585 = vld [vmem:[#allocation7 + $0x8] sm:$0xf]
    %v586 = vld [vmem:[#allocation7 + $0xc] sm:$0xf]
    %v587 = vld [vmem:[#allocation7 + $0x10] sm:$0xf]
    %v588 = vld [vmem:[#allocation7 + $0x14] sm:$0xf]
    %v589 = vld [vmem:[#allocation7 + $0x18] sm:$0xf]
    %v590 = vld [vmem:[#allocation7 + $0x1c] sm:$0xf]
    %v591 = vld [vmem:[#allocation7 + $0x20] sm:$0xf]
    %v592 = vld [vmem:[#allocation7 + $0x24] sm:$0xf]
    %v593 = vld [vmem:[#allocation7 + $0x28] sm:$0xf]
    %v594 = vld [vmem:[#allocation7 + $0x2c] sm:$0xf]
    %v595 = vld [vmem:[#allocation7 + $0x30] sm:$0xf]
    %v596 = vld [vmem:[#allocation7 + $0x34] sm:$0xf]
    %v597 = vld [vmem:[#allocation7 + $0x38] sm:$0xf]
    %v598 = vld [vmem:[#allocation7 + $0x3c] sm:$0xf]
    %v599 = vld [vmem:[#allocation7 + $0x40] sm:$0xf]
    %v600 = vld [vmem:[#allocation7 + $0x44] sm:$0xf]
    %v601 = vld [vmem:[#allocation7 + $0x48] sm:$0xf]
    %v602 = vld [vmem:[#allocation7 + $0x4c] sm:$0xf]
    %v603 = vld [vmem:[#allocation7 + $0x50] sm:$0xf]
    %v604 = vld [vmem:[#allocation7 + $0x54] sm:$0xf]
    %v605 = vld [vmem:[#allocation7 + $0x58] sm:$0xf]
    %v606 = vld [vmem:[#allocation7 + $0x5c] sm:$0xf]
    %v607 = vld [vmem:[#allocation7 + $0x60] sm:$0xf]
    %v608 = vld [vmem:[#allocation7 + $0x64] sm:$0xf]
    %v609 = vld [vmem:[#allocation7 + $0x68] sm:$0xf]
    %v610 = vld [vmem:[#allocation7 + $0x6c] sm:$0xf]
    %v611 = vld [vmem:[#allocation7 + $0x70] sm:$0xf]
    %v612 = vld [vmem:[#allocation7 + $0x74] sm:$0xf]
    %v613 = vld [vmem:[#allocation7 + $0x78] sm:$0xf]
    %v614 = vld [vmem:[#allocation7 + $0x7c] sm:$0xf]
    %v631 = vunpack.c.l.b16 %v599
    %v632 = vunpack.c.l.b16 %v600
    %v633 = vunpack.c.l.b16 %v601
    %v634 = vunpack.c.l.b16 %v602
    %v635 = vunpack.c.l.b16 %v603
    %v636 = vunpack.c.l.b16 %v604
    %v637 = vunpack.c.l.b16 %v605
    %v638 = vunpack.c.l.b16 %v606
    %v639 = vunpack.c.l.b16 %v607
    %v640 = vunpack.c.l.b16 %v608
    %v641 = vunpack.c.l.b16 %v609
    %v642 = vunpack.c.l.b16 %v610
    %v643 = vunpack.c.l.b16 %v611
    %v644 = vunpack.c.l.b16 %v612
    %v645 = vunpack.c.l.b16 %v613
    %v646 = vunpack.c.l.b16 %v614
    %v647 = vpack.c.b16 %v632, %v631
    %v648 = vpack.c.b16 %v634, %v633
    %v649 = vpack.c.b16 %v636, %v635
    %v650 = vpack.c.b16 %v638, %v637
    %v651 = vpack.c.b16 %v640, %v639
    %v652 = vpack.c.b16 %v642, %v641
    %v653 = vpack.c.b16 %v644, %v643
    %v654 = vpack.c.b16 %v646, %v645
    %663 = vmatprep.subr.bf16.mxu0 0
    %664 = vmatpush1.bf16.msra.mxu0 %v647
    %665 = vmatprep.subr.bf16.mxu0 0
    %666 = vmatpush1.bf16.msra.mxu0 %v648
    %667 = vmatprep.subr.bf16.mxu0 0
    %668 = vmatpush1.bf16.msra.mxu0 %v649
    %669 = vmatprep.subr.bf16.mxu0 0
    %670 = vmatpush1.bf16.msra.mxu0 %v650
    %671 = vmatprep.subr.bf16.mxu0 0
    %672 = vmatpush1.bf16.msra.mxu0 %v651
    %673 = vmatprep.subr.bf16.mxu0 0
    %674 = vmatpush1.bf16.msra.mxu0 %v652
    %675 = vmatprep.subr.bf16.mxu0 0
    %676 = vmatpush1.bf16.msra.mxu0 %v653
    %677 = vmatprep.subr.bf16.mxu0 0
    %678 = vmatpush1.bf16.msra.mxu0 %v654
    %679 = vmatprep.subr.bf16.mxu0 0
    %680 = vmatpush1.bf16.msra.mxu0 0
    %681 = vmatprep.subr.bf16.mxu0 0
    %682 = vmatpush1.bf16.msra.mxu0 0
    %683 = vmatprep.subr.bf16.mxu0 0
    %684 = vmatpush1.bf16.msra.mxu0 0
    %685 = vmatprep.subr.bf16.mxu0 0
    %686 = vmatpush1.bf16.msra.mxu0 0
    %687 = vmatprep.subr.bf16.mxu0 0
    %688 = vmatpush1.bf16.msra.mxu0 0
    %689 = vmatprep.subr.bf16.mxu0 0
    %690 = vmatpush1.bf16.msra.mxu0 0
    %691 = vmatprep.subr.bf16.mxu0 0
    %692 = vmatpush1.bf16.msra.mxu0 0
    %693 = vmatprep.subr.bf16.mxu0 0
    %694 = vmatpush1.bf16.msra.mxu0 0
    %695 = vmatprep.mubr.bf16.mxu0 0
    %696 = vmatmul.mubr.bf16.gmra.mrb[0].mxu0 %v374
    %v697 = vpop.f32.mrb[0].mxu0
    %v698 = vadd.f32 0.0, %v697
    %v699 = vpop.f32.mrb[0].mxu0
    %v700 = vpop.f32.mrb[0].mxu0
    %v701 = vadd.f32 0.0, %v700
    %v702 = vpop.f32.mrb[0].mxu0
    %703 = vmatprep.mubr.bf16.mxu0 0
    %704 = vmatmul.mubr.bf16.gmra.mrb[0].mxu0 %v375
    %v705 = vpop.f32.mrb[0].mxu0
    %v706 = vadd.f32 0.0, %v705
    %v707 = vpop.f32.mrb[0].mxu0
    %v708 = vpop.f32.mrb[0].mxu0
    %v709 = vadd.f32 0.0, %v708
    %v710 = vpop.f32.mrb[0].mxu0
    %711 = vmatprep.mubr.bf16.mxu0 0
    %712 = vmatmul.mubr.bf16.gmra.mrb[0].mxu0 %v376
    %v713 = vpop.f32.mrb[0].mxu0
    %v714 = vadd.f32 0.0, %v713
    %v715 = vpop.f32.mrb[0].mxu0
    %v716 = vpop.f32.mrb[0].mxu0
    %v717 = vadd.f32 0.0, %v716
    %v718 = vpop.f32.mrb[0].mxu0
    %719 = vmatprep.mubr.bf16.mxu0 0
    %720 = vmatmul.mubr.bf16.gmra.mrb[0].mxu0 %v377
    %v721 = vpop.f32.mrb[0].mxu0
    %v722 = vadd.f32 0.0, %v721
    %v723 = vpop.f32.mrb[0].mxu0
    %v724 = vpop.f32.mrb[0].mxu0
    %v725 = vadd.f32 0.0, %v724
    %v726 = vpop.f32.mrb[0].mxu0
    %727 = vmatprep.mubr.bf16.mxu0 0
    %728 = vmatmul.mubr.bf16.gmra.mrb[0].mxu0 %v378
    %v729 = vpop.f32.mrb[0].mxu0
    %v730 = vadd.f32 0.0, %v729
    %v731 = vpop.f32.mrb[0].mxu0
    %v732 = vpop.f32.mrb[0].mxu0
    %v733 = vadd.f32 0.0, %v732
    %v734 = vpop.f32.mrb[0].mxu0
    %735 = vmatprep.mubr.bf16.mxu0 0
    %736 = vmatmul.mubr.bf16.gmra.mrb[0].mxu0 %v379
    %v737 = vpop.f32.mrb[0].mxu0
    %v738 = vadd.f32 0.0, %v737
    %v739 = vpop.f32.mrb[0].mxu0
    %v740 = vpop.f32.mrb[0].mxu0
    %v741 = vadd.f32 0.0, %v740
    %v742 = vpop.f32.mrb[0].mxu0
    %743 = vmatprep.mubr.bf16.mxu0 0
    %744 = vmatmul.mubr.bf16.gmra.mrb[0].mxu0 %v380
    %v745 = vpop.f32.mrb[0].mxu0
    %v746 = vadd.f32 0.0, %v745
    %v747 = vpop.f32.mrb[0].mxu0
    %v748 = vpop.f32.mrb[0].mxu0
    %v749 = vadd.f32 0.0, %v748
    %v750 = vpop.f32.mrb[0].mxu0
    %751 = vmatprep.mubr.bf16.mxu0 0
    %752 = vmatmul.mubr.bf16.gmra.mrb[0].mxu0 %v381
    %v753 = vpop.f32.mrb[0].mxu0
    %v754 = vadd.f32 0.0, %v753
    %v755 = vpop.f32.mrb[0].mxu0
    %v756 = vpop.f32.mrb[0].mxu0
    %v757 = vadd.f32 0.0, %v756
    %v758 = vpop.f32.mrb[0].mxu0
    %759 = vmatprep.mubr.bf16.mxu0 0
    %760 = vmatmul.mubr.bf16.gmra.mrb[0].mxu0 %v382
    %v761 = vpop.f32.mrb[0].mxu0
    %v762 = vadd.f32 0.0, %v761
    %v763 = vpop.f32.mrb[0].mxu0
    %v764 = vpop.f32.mrb[0].mxu0
    %v765 = vadd.f32 0.0, %v764
    %v766 = vpop.f32.mrb[0].mxu0
    %767 = vmatprep.mubr.bf16.mxu0 0
    %768 = vmatmul.mubr.bf16.gmra.mrb[0].mxu0 %v383
    %v769 = vpop.f32.mrb[0].mxu0
    %v770 = vadd.f32 0.0, %v769
    %v771 = vpop.f32.mrb[0].mxu0
    %v772 = vpop.f32.mrb[0].mxu0
    %v773 = vadd.f32 0.0, %v772
    %v774 = vpop.f32.mrb[0].mxu0
    %775 = vmatprep.mubr.bf16.mxu0 0
    %776 = vmatmul.mubr.bf16.gmra.mrb[0].mxu0 %v384
    %v777 = vpop.f32.mrb[0].mxu0
    %v778 = vadd.f32 0.0, %v777
    %v779 = vpop.f32.mrb[0].mxu0
    %v780 = vpop.f32.mrb[0].mxu0
    %v781 = vadd.f32 0.0, %v780
    %v782 = vpop.f32.mrb[0].mxu0
    %783 = vmatprep.mubr.bf16.mxu0 0
    %784 = vmatmul.mubr.bf16.gmra.mrb[0].mxu0 %v385
    %v785 = vpop.f32.mrb[0].mxu0
    %v786 = vadd.f32 0.0, %v785
    %v787 = vpop.f32.mrb[0].mxu0
    %v788 = vpop.f32.mrb[0].mxu0
    %v789 = vadd.f32 0.0, %v788
    %v790 = vpop.f32.mrb[0].mxu0
    %791 = vmatprep.mubr.bf16.mxu0 0
    %792 = vmatmul.mubr.bf16.gmra.mrb[0].mxu0 %v386
    %v793 = vpop.f32.mrb[0].mxu0
    %v794 = vadd.f32 0.0, %v793
    %v795 = vpop.f32.mrb[0].mxu0
    %v796 = vpop.f32.mrb[0].mxu0
    %v797 = vadd.f32 0.0, %v796
    %v798 = vpop.f32.mrb[0].mxu0
    %799 = vmatprep.mubr.bf16.mxu0 0
    %800 = vmatmul.mubr.bf16.gmra.mrb[0].mxu0 %v387
    %v801 = vpop.f32.mrb[0].mxu0
    %v802 = vadd.f32 0.0, %v801
    %v803 = vpop.f32.mrb[0].mxu0
    %v804 = vpop.f32.mrb[0].mxu0
    %v805 = vadd.f32 0.0, %v804
    %v806 = vpop.f32.mrb[0].mxu0
    %807 = vmatprep.mubr.bf16.mxu0 0
    %808 = vmatmul.mubr.bf16.gmra.mrb[0].mxu0 %v388
    %v809 = vpop.f32.mrb[0].mxu0
    %v810 = vadd.f32 0.0, %v809
    %v811 = vpop.f32.mrb[0].mxu0
    %v812 = vpop.f32.mrb[0].mxu0
    %v813 = vadd.f32 0.0, %v812
    %v814 = vpop.f32.mrb[0].mxu0
    %815 = vmatprep.mubr.bf16.mxu0 0
    %816 = vmatmul.mubr.bf16.gmra.mrb[0].mxu0 %v389
    %v817 = vpop.f32.mrb[0].mxu0
    %v818 = vadd.f32 0.0, %v817
    %v819 = vpop.f32.mrb[0].mxu0
    %v820 = vpop.f32.mrb[0].mxu0
    %v821 = vadd.f32 0.0, %v820
    %v822 = vpop.f32.mrb[0].mxu0
    %823 = vdwg.mxu0
    %v840 = vunpack.c.l.b16 %v583
    %v841 = vunpack.c.l.b16 %v584
    %v842 = vunpack.c.l.b16 %v585
    %v843 = vunpack.c.l.b16 %v586
    %v844 = vunpack.c.l.b16 %v587
    %v845 = vunpack.c.l.b16 %v588
    %v846 = vunpack.c.l.b16 %v589
    %v847 = vunpack.c.l.b16 %v590
    %v848 = vunpack.c.l.b16 %v591
    %v849 = vunpack.c.l.b16 %v592
    %v850 = vunpack.c.l.b16 %v593
    %v851 = vunpack.c.l.b16 %v594
    %v852 = vunpack.c.l.b16 %v595
    %v853 = vunpack.c.l.b16 %v596
    %v854 = vunpack.c.l.b16 %v597
    %v855 = vunpack.c.l.b16 %v598
    %v856 = vpack.c.b16 %v841, %v840
    %v857 = vpack.c.b16 %v843, %v842
    %v858 = vpack.c.b16 %v845, %v844
    %v859 = vpack.c.b16 %v847, %v846
    %v860 = vpack.c.b16 %v849, %v848
    %v861 = vpack.c.b16 %v851, %v850
    %v862 = vpack.c.b16 %v853, %v852
    %v863 = vpack.c.b16 %v855, %v854
    %872 = vmatprep.subr.bf16.mxu0 0
    %873 = vmatpush1.bf16.msra.mxu0 %v856
    %874 = vmatprep.subr.bf16.mxu0 0
    %875 = vmatpush1.bf16.msra.mxu0 %v857
    %876 = vmatprep.subr.bf16.mxu0 0
    %877 = vmatpush1.bf16.msra.mxu0 %v858
    %878 = vmatprep.subr.bf16.mxu0 0
    %879 = vmatpush1.bf16.msra.mxu0 %v859
    %880 = vmatprep.subr.bf16.mxu0 0
    %881 = vmatpush1.bf16.msra.mxu0 %v860
    %882 = vmatprep.subr.bf16.mxu0 0
    %883 = vmatpush1.bf16.msra.mxu0 %v861
    %884 = vmatprep.subr.bf16.mxu0 0
    %885 = vmatpush1.bf16.msra.mxu0 %v862
    %886 = vmatprep.subr.bf16.mxu0 0
    %887 = vmatpush1.bf16.msra.mxu0 %v863
    %888 = vmatprep.subr.bf16.mxu0 0
    %889 = vmatpush1.bf16.msra.mxu0 0
    %890 = vmatprep.subr.bf16.mxu0 0
    %891 = vmatpush1.bf16.msra.mxu0 0
    %892 = vmatprep.subr.bf16.mxu0 0
    %893 = vmatpush1.bf16.msra.mxu0 0
    %894 = vmatprep.subr.bf16.mxu0 0
    %895 = vmatpush1.bf16.msra.mxu0 0
    %896 = vmatprep.subr.bf16.mxu0 0
    %897 = vmatpush1.bf16.msra.mxu0 0
    %898 = vmatprep.subr.bf16.mxu0 0
    %899 = vmatpush1.bf16.msra.mxu0 0
    %900 = vmatprep.subr.bf16.mxu0 0
    %901 = vmatpush1.bf16.msra.mxu0 0
    %902 = vmatprep.subr.bf16.mxu0 0
    %903 = vmatpush1.bf16.msra.mxu0 0
    %904 = vmatprep.mubr.bf16.mxu0 0
    %905 = vmatmul.mubr.bf16.gmra.mrb[0].mxu0 %v567
    %v906 = vpop.f32.mrb[0].mxu0
    %v907 = vadd.f32 %v698, %v906
    %v908 = vpop.f32.mrb[0].mxu0
    %v909 = vpop.f32.mrb[0].mxu0
    %v910 = vadd.f32 %v701, %v909
    %v911 = vpop.f32.mrb[0].mxu0
    %912 = vmatprep.mubr.bf16.mxu0 0
    %913 = vmatmul.mubr.bf16.gmra.mrb[0].mxu0 %v568
    %v914 = vpop.f32.mrb[0].mxu0
    %v915 = vadd.f32 %v706, %v914
    %v916 = vpop.f32.mrb[0].mxu0
    %v917 = vpop.f32.mrb[0].mxu0
    %v918 = vadd.f32 %v709, %v917
    %v919 = vpop.f32.mrb[0].mxu0
    %920 = vmatprep.mubr.bf16.mxu0 0
    %921 = vmatmul.mubr.bf16.gmra.mrb[0].mxu0 %v569
    %v922 = vpop.f32.mrb[0].mxu0
    %v923 = vadd.f32 %v714, %v922
    %v924 = vpop.f32.mrb[0].mxu0
    %v925 = vpop.f32.mrb[0].mxu0
    %v926 = vadd.f32 %v717, %v925
    %v927 = vpop.f32.mrb[0].mxu0
    %928 = vmatprep.mubr.bf16.mxu0 0
    %929 = vmatmul.mubr.bf16.gmra.mrb[0].mxu0 %v570
    %v930 = vpop.f32.mrb[0].mxu0
    %v931 = vadd.f32 %v722, %v930
    %v932 = vpop.f32.mrb[0].mxu0
    %v933 = vpop.f32.mrb[0].mxu0
    %v934 = vadd.f32 %v725, %v933
    %v935 = vpop.f32.mrb[0].mxu0
    %936 = vmatprep.mubr.bf16.mxu0 0
    %937 = vmatmul.mubr.bf16.gmra.mrb[0].mxu0 %v571
    %v938 = vpop.f32.mrb[0].mxu0
    %v939 = vadd.f32 %v730, %v938
    %v940 = vpop.f32.mrb[0].mxu0
    %v941 = vpop.f32.mrb[0].mxu0
    %v942 = vadd.f32 %v733, %v941
    %v943 = vpop.f32.mrb[0].mxu0
    %944 = vmatprep.mubr.bf16.mxu0 0
    %945 = vmatmul.mubr.bf16.gmra.mrb[0].mxu0 %v572
    %v946 = vpop.f32.mrb[0].mxu0
    %v947 = vadd.f32 %v738, %v946
    %v948 = vpop.f32.mrb[0].mxu0
    %v949 = vpop.f32.mrb[0].mxu0
    %v950 = vadd.f32 %v741, %v949
    %v951 = vpop.f32.mrb[0].mxu0
    %952 = vmatprep.mubr.bf16.mxu0 0
    %953 = vmatmul.mubr.bf16.gmra.mrb[0].mxu0 %v573
    %v954 = vpop.f32.mrb[0].mxu0
    %v955 = vadd.f32 %v746, %v954
    %v956 = vpop.f32.mrb[0].mxu0
    %v957 = vpop.f32.mrb[0].mxu0
    %v958 = vadd.f32 %v749, %v957
    %v959 = vpop.f32.mrb[0].mxu0
    %960 = vmatprep.mubr.bf16.mxu0 0
    %961 = vmatmul.mubr.bf16.gmra.mrb[0].mxu0 %v574
    %v962 = vpop.f32.mrb[0].mxu0
    %v963 = vadd.f32 %v754, %v962
    %v964 = vpop.f32.mrb[0].mxu0
    %v965 = vpop.f32.mrb[0].mxu0
    %v966 = vadd.f32 %v757, %v965
    %v967 = vpop.f32.mrb[0].mxu0
    %968 = vmatprep.mubr.bf16.mxu0 0
    %969 = vmatmul.mubr.bf16.gmra.mrb[0].mxu0 %v575
    %v970 = vpop.f32.mrb[0].mxu0
    %v971 = vadd.f32 %v762, %v970
    %v972 = vpop.f32.mrb[0].mxu0
    %v973 = vpop.f32.mrb[0].mxu0
    %v974 = vadd.f32 %v765, %v973
    %v975 = vpop.f32.mrb[0].mxu0
    %976 = vmatprep.mubr.bf16.mxu0 0
    %977 = vmatmul.mubr.bf16.gmra.mrb[0].mxu0 %v576
    %v978 = vpop.f32.mrb[0].mxu0
    %v979 = vadd.f32 %v770, %v978
    %v980 = vpop.f32.mrb[0].mxu0
    %v981 = vpop.f32.mrb[0].mxu0
    %v982 = vadd.f32 %v773, %v981
    %v983 = vpop.f32.mrb[0].mxu0
    %984 = vmatprep.mubr.bf16.mxu0 0
    %985 = vmatmul.mubr.bf16.gmra.mrb[0].mxu0 %v577
    %v986 = vpop.f32.mrb[0].mxu0
    %v987 = vadd.f32 %v778, %v986
    %v988 = vpop.f32.mrb[0].mxu0
    %v989 = vpop.f32.mrb[0].mxu0
    %v990 = vadd.f32 %v781, %v989
    %v991 = vpop.f32.mrb[0].mxu0
    %992 = vmatprep.mubr.bf16.mxu0 0
    %993 = vmatmul.mubr.bf16.gmra.mrb[0].mxu0 %v578
    %v994 = vpop.f32.mrb[0].mxu0
    %v995 = vadd.f32 %v786, %v994
    %v996 = vpop.f32.mrb[0].mxu0
    %v997 = vpop.f32.mrb[0].mxu0
    %v998 = vadd.f32 %v789, %v997
    %v999 = vpop.f32.mrb[0].mxu0
    %1000 = vmatprep.mubr.bf16.mxu0 0
    %1001 = vmatmul.mubr.bf16.gmra.mrb[0].mxu0 %v579
    %v1002 = vpop.f32.mrb[0].mxu0
    %v1003 = vadd.f32 %v794, %v1002
    %v1004 = vpop.f32.mrb[0].mxu0
    %v1005 = vpop.f32.mrb[0].mxu0
    %v1006 = vadd.f32 %v797, %v1005
    %v1007 = vpop.f32.mrb[0].mxu0
    %1008 = vmatprep.mubr.bf16.mxu0 0
    %1009 = vmatmul.mubr.bf16.gmra.mrb[0].mxu0 %v580
    %v1010 = vpop.f32.mrb[0].mxu0
    %v1011 = vadd.f32 %v802, %v1010
    %v1012 = vpop.f32.mrb[0].mxu0
    %v1013 = vpop.f32.mrb[0].mxu0
    %v1014 = vadd.f32 %v805, %v1013
    %v1015 = vpop.f32.mrb[0].mxu0
    %1016 = vmatprep.mubr.bf16.mxu0 0
    %1017 = vmatmul.mubr.bf16.gmra.mrb[0].mxu0 %v581
    %v1018 = vpop.f32.mrb[0].mxu0
    %v1019 = vadd.f32 %v810, %v1018
    %v1020 = vpop.f32.mrb[0].mxu0
    %v1021 = vpop.f32.mrb[0].mxu0
    %v1022 = vadd.f32 %v813, %v1021
    %v1023 = vpop.f32.mrb[0].mxu0
    %1024 = vmatprep.mubr.bf16.mxu0 0
    %1025 = vmatmul.mubr.bf16.gmra.mrb[0].mxu0 %v582
    %v1026 = vpop.f32.mrb[0].mxu0
    %v1027 = vadd.f32 %v818, %v1026
    %v1028 = vpop.f32.mrb[0].mxu0
    %v1029 = vpop.f32.mrb[0].mxu0
    %v1030 = vadd.f32 %v821, %v1029
    %v1031 = vpop.f32.mrb[0].mxu0
    %1032 = vdwg.mxu0
    %v1033 = vld [vmem:[%s3] sm:$0x1]
    %v1035 = vlaneseq
    %v1036 = vshrl.u32 %v1035, 7
    %v1037 = vsub.s32 0, %v1036
    %v1038 = vrot.slane %v1033, %v1037
    %v1040 = vadd.f32 %v907, %v1038
    %v1041 = vadd.f32 %v910, %v1038
    %v1042 = vadd.f32 %v915, %v1038
    %v1043 = vadd.f32 %v918, %v1038
    %v1044 = vadd.f32 %v923, %v1038
    %v1045 = vadd.f32 %v926, %v1038
    %v1046 = vadd.f32 %v931, %v1038
    %v1047 = vadd.f32 %v934, %v1038
    %v1048 = vadd.f32 %v939, %v1038
    %v1049 = vadd.f32 %v942, %v1038
    %v1050 = vadd.f32 %v947, %v1038
    %v1051 = vadd.f32 %v950, %v1038
    %v1052 = vadd.f32 %v955, %v1038
    %v1053 = vadd.f32 %v958, %v1038
    %v1054 = vadd.f32 %v963, %v1038
    %v1055 = vadd.f32 %v966, %v1038
    %v1056 = vadd.f32 %v971, %v1038
    %v1057 = vadd.f32 %v974, %v1038
    %v1058 = vadd.f32 %v979, %v1038
    %v1059 = vadd.f32 %v982, %v1038
    %v1060 = vadd.f32 %v987, %v1038
    %v1061 = vadd.f32 %v990, %v1038
    %v1062 = vadd.f32 %v995, %v1038
    %v1063 = vadd.f32 %v998, %v1038
    %v1064 = vadd.f32 %v1003, %v1038
    %v1065 = vadd.f32 %v1006, %v1038
    %v1066 = vadd.f32 %v1011, %v1038
    %v1067 = vadd.f32 %v1014, %v1038
    %v1068 = vadd.f32 %v1019, %v1038
    %v1069 = vadd.f32 %v1022, %v1038
    %v1070 = vadd.f32 %v1027, %v1038
    %v1071 = vadd.f32 %v1030, %v1038
    %v1072 = vadd.f32 %v1040, %v1041
    %v1073 = vadd.f32 %v1072, %v1042
    %v1074 = vadd.f32 %v1073, %v1043
    %v1075 = vadd.f32 %v1074, %v1044
    %v1076 = vadd.f32 %v1075, %v1045
    %v1077 = vadd.f32 %v1076, %v1046
    %v1078 = vadd.f32 %v1077, %v1047
    %v1079 = vadd.f32 %v1078, %v1048
    %v1080 = vadd.f32 %v1079, %v1049
    %v1081 = vadd.f32 %v1080, %v1050
    %v1082 = vadd.f32 %v1081, %v1051
    %v1083 = vadd.f32 %v1082, %v1052
    %v1084 = vadd.f32 %v1083, %v1053
    %v1085 = vadd.f32 %v1084, %v1054
    %v1086 = vadd.f32 %v1085, %v1055
    %v1087 = vadd.f32 %v1086, %v1056
    %v1088 = vadd.f32 %v1087, %v1057
    %v1089 = vadd.f32 %v1088, %v1058
    %v1090 = vadd.f32 %v1089, %v1059
    %v1091 = vadd.f32 %v1090, %v1060
    %v1092 = vadd.f32 %v1091, %v1061
    %v1093 = vadd.f32 %v1092, %v1062
    %v1094 = vadd.f32 %v1093, %v1063
    %v1095 = vadd.f32 %v1094, %v1064
    %v1096 = vadd.f32 %v1095, %v1065
    %v1097 = vadd.f32 %v1096, %v1066
    %v1098 = vadd.f32 %v1097, %v1067
    %v1099 = vadd.f32 %v1098, %v1068
    %v1100 = vadd.f32 %v1099, %v1069
    %v1101 = vadd.f32 %v1100, %v1070
    %v1102 = vadd.f32 %v1101, %v1071
    %v1103 = vrot.slane %v1102, 4
    %v1104 = vadd.f32 %v1102, %v1103
    %v1105 = vrot.slane %v1104, 2
    %v1106 = vadd.f32 %v1104, %v1105
    %v1107 = vrot.slane %v1106, 1
    %v1108 = vadd.f32 %v1106, %v1107
    %v1109 = vrcp.pop 256.0
    %v1110 = vmul.f32 %v1108, %v1109
    %v1111 = vsub.f32 %v1040, %v1110
    %v1112 = vsub.f32 %v1041, %v1110
    %v1113 = vsub.f32 %v1042, %v1110
    %v1114 = vsub.f32 %v1043, %v1110
    %v1115 = vsub.f32 %v1044, %v1110
    %v1116 = vsub.f32 %v1045, %v1110
    %v1117 = vsub.f32 %v1046, %v1110
    %v1118 = vsub.f32 %v1047, %v1110
    %v1119 = vsub.f32 %v1048, %v1110
    %v1120 = vsub.f32 %v1049, %v1110
    %v1121 = vsub.f32 %v1050, %v1110
    %v1122 = vsub.f32 %v1051, %v1110
    %v1123 = vsub.f32 %v1052, %v1110
    %v1124 = vsub.f32 %v1053, %v1110
    %v1125 = vsub.f32 %v1054, %v1110
    %v1126 = vsub.f32 %v1055, %v1110
    %v1127 = vsub.f32 %v1056, %v1110
    %v1128 = vsub.f32 %v1057, %v1110
    %v1129 = vsub.f32 %v1058, %v1110
    %v1130 = vsub.f32 %v1059, %v1110
    %v1131 = vsub.f32 %v1060, %v1110
    %v1132 = vsub.f32 %v1061, %v1110
    %v1133 = vsub.f32 %v1062, %v1110
    %v1134 = vsub.f32 %v1063, %v1110
    %v1135 = vsub.f32 %v1064, %v1110
    %v1136 = vsub.f32 %v1065, %v1110
    %v1137 = vsub.f32 %v1066, %v1110
    %v1138 = vsub.f32 %v1067, %v1110
    %v1139 = vsub.f32 %v1068, %v1110
    %v1140 = vsub.f32 %v1069, %v1110
    %v1141 = vsub.f32 %v1070, %v1110
    %v1142 = vsub.f32 %v1071, %v1110
    %v1143 = vmul.f32 %v1111, %v1111
    %v1144 = vmul.f32 %v1112, %v1112
    %v1145 = vmul.f32 %v1113, %v1113
    %v1146 = vmul.f32 %v1114, %v1114
    %v1147 = vmul.f32 %v1115, %v1115
    %v1148 = vmul.f32 %v1116, %v1116
    %v1149 = vmul.f32 %v1117, %v1117
    %v1150 = vmul.f32 %v1118, %v1118
    %v1151 = vmul.f32 %v1119, %v1119
    %v1152 = vmul.f32 %v1120, %v1120
    %v1153 = vmul.f32 %v1121, %v1121
    %v1154 = vmul.f32 %v1122, %v1122
    %v1155 = vmul.f32 %v1123, %v1123
    %v1156 = vmul.f32 %v1124, %v1124
    %v1157 = vmul.f32 %v1125, %v1125
    %v1158 = vmul.f32 %v1126, %v1126
    %v1159 = vmul.f32 %v1127, %v1127
    %v1160 = vmul.f32 %v1128, %v1128
    %v1161 = vmul.f32 %v1129, %v1129
    %v1162 = vmul.f32 %v1130, %v1130
    %v1163 = vmul.f32 %v1131, %v1131
    %v1164 = vmul.f32 %v1132, %v1132
    %v1165 = vmul.f32 %v1133, %v1133
    %v1166 = vmul.f32 %v1134, %v1134
    %v1167 = vmul.f32 %v1135, %v1135
    %v1168 = vmul.f32 %v1136, %v1136
    %v1169 = vmul.f32 %v1137, %v1137
    %v1170 = vmul.f32 %v1138, %v1138
    %v1171 = vmul.f32 %v1139, %v1139
    %v1172 = vmul.f32 %v1140, %v1140
    %v1173 = vmul.f32 %v1141, %v1141
    %v1174 = vmul.f32 %v1142, %v1142
    %v1175 = vadd.f32 %v1143, %v1144
    %v1176 = vadd.f32 %v1175, %v1145
    %v1177 = vadd.f32 %v1176, %v1146
    %v1178 = vadd.f32 %v1177, %v1147
    %v1179 = vadd.f32 %v1178, %v1148
    %v1180 = vadd.f32 %v1179, %v1149
    %v1181 = vadd.f32 %v1180, %v1150
    %v1182 = vadd.f32 %v1181, %v1151
    %v1183 = vadd.f32 %v1182, %v1152
    %v1184 = vadd.f32 %v1183, %v1153
    %v1185 = vadd.f32 %v1184, %v1154
    %v1186 = vadd.f32 %v1185, %v1155
    %v1187 = vadd.f32 %v1186, %v1156
    %v1188 = vadd.f32 %v1187, %v1157
    %v1189 = vadd.f32 %v1188, %v1158
    %v1190 = vadd.f32 %v1189, %v1159
    %v1191 = vadd.f32 %v1190, %v1160
    %v1192 = vadd.f32 %v1191, %v1161
    %v1193 = vadd.f32 %v1192, %v1162
    %v1194 = vadd.f32 %v1193, %v1163
    %v1195 = vadd.f32 %v1194, %v1164
    %v1196 = vadd.f32 %v1195, %v1165
    %v1197 = vadd.f32 %v1196, %v1166
    %v1198 = vadd.f32 %v1197, %v1167
    %v1199 = vadd.f32 %v1198, %v1168
    %v1200 = vadd.f32 %v1199, %v1169
    %v1201 = vadd.f32 %v1200, %v1170
    %v1202 = vadd.f32 %v1201, %v1171
    %v1203 = vadd.f32 %v1202, %v1172
    %v1204 = vadd.f32 %v1203, %v1173
    %v1205 = vadd.f32 %v1204, %v1174
    %v1206 = vrot.slane %v1205, 4
    %v1207 = vadd.f32 %v1205, %v1206
    %v1208 = vrot.slane %v1207, 2
    %v1209 = vadd.f32 %v1207, %v1208
    %v1210 = vrot.slane %v1209, 1
    %v1211 = vadd.f32 %v1209, %v1210
    %v1212 = vmul.f32 %v1211, %v1109
    %v1213 = vadd.f32 %v1212, 1e-05
    %v1214 = vrsqrt.pop %v1213
    %v1215 = vmul.f32 %v1111, %v1214
    %v1216 = vmul.f32 %v1112, %v1214
    %v1217 = vmul.f32 %v1113, %v1214
    %v1218 = vmul.f32 %v1114, %v1214
    %v1219 = vmul.f32 %v1115, %v1214
    %v1220 = vmul.f32 %v1116, %v1214
    %v1221 = vmul.f32 %v1117, %v1214
    %v1222 = vmul.f32 %v1118, %v1214
    %v1223 = vmul.f32 %v1119, %v1214
    %v1224 = vmul.f32 %v1120, %v1214
    %v1225 = vmul.f32 %v1121, %v1214
    %v1226 = vmul.f32 %v1122, %v1214
    %v1227 = vmul.f32 %v1123, %v1214
    %v1228 = vmul.f32 %v1124, %v1214
    %v1229 = vmul.f32 %v1125, %v1214
    %v1230 = vmul.f32 %v1126, %v1214
    %v1231 = vmul.f32 %v1127, %v1214
    %v1232 = vmul.f32 %v1128, %v1214
    %v1233 = vmul.f32 %v1129, %v1214
    %v1234 = vmul.f32 %v1130, %v1214
    %v1235 = vmul.f32 %v1131, %v1214
    %v1236 = vmul.f32 %v1132, %v1214
    %v1237 = vmul.f32 %v1133, %v1214
    %v1238 = vmul.f32 %v1134, %v1214
    %v1239 = vmul.f32 %v1135, %v1214
    %v1240 = vmul.f32 %v1136, %v1214
    %v1241 = vmul.f32 %v1137, %v1214
    %v1242 = vmul.f32 %v1138, %v1214
    %v1243 = vmul.f32 %v1139, %v1214
    %v1244 = vmul.f32 %v1140, %v1214
    %v1245 = vmul.f32 %v1141, %v1214
    %v1246 = vmul.f32 %v1142, %v1214
    %v1247 = vld [vmem:[%s4] sm:$0x1]
    %v1249 = vlaneseq
    %v1250 = vshrl.u32 %v1249, 7
    %v1251 = vsub.s32 0, %v1250
    %v1252 = vrot.slane %v1247, %v1251
    %v1254 = vmul.f32 %v1215, %v1252
    %v1255 = vmul.f32 %v1216, %v1252
    %v1256 = vmul.f32 %v1217, %v1252
    %v1257 = vmul.f32 %v1218, %v1252
    %v1258 = vmul.f32 %v1219, %v1252
    %v1259 = vmul.f32 %v1220, %v1252
    %v1260 = vmul.f32 %v1221, %v1252
    %v1261 = vmul.f32 %v1222, %v1252
    %v1262 = vmul.f32 %v1223, %v1252
    %v1263 = vmul.f32 %v1224, %v1252
    %v1264 = vmul.f32 %v1225, %v1252
    %v1265 = vmul.f32 %v1226, %v1252
    %v1266 = vmul.f32 %v1227, %v1252
    %v1267 = vmul.f32 %v1228, %v1252
    %v1268 = vmul.f32 %v1229, %v1252
    %v1269 = vmul.f32 %v1230, %v1252
    %v1270 = vmul.f32 %v1231, %v1252
    %v1271 = vmul.f32 %v1232, %v1252
    %v1272 = vmul.f32 %v1233, %v1252
    %v1273 = vmul.f32 %v1234, %v1252
    %v1274 = vmul.f32 %v1235, %v1252
    %v1275 = vmul.f32 %v1236, %v1252
    %v1276 = vmul.f32 %v1237, %v1252
    %v1277 = vmul.f32 %v1238, %v1252
    %v1278 = vmul.f32 %v1239, %v1252
    %v1279 = vmul.f32 %v1240, %v1252
    %v1280 = vmul.f32 %v1241, %v1252
    %v1281 = vmul.f32 %v1242, %v1252
    %v1282 = vmul.f32 %v1243, %v1252
    %v1283 = vmul.f32 %v1244, %v1252
    %v1284 = vmul.f32 %v1245, %v1252
    %v1285 = vmul.f32 %v1246, %v1252
    %v1286 = vld [vmem:[%s5] sm:$0x1]
    %v1288 = vlaneseq
    %v1289 = vshrl.u32 %v1288, 7
    %v1290 = vsub.s32 0, %v1289
    %v1291 = vrot.slane %v1286, %v1290
    %v1293 = vadd.f32 %v1254, %v1291
    %v1294 = vadd.f32 %v1255, %v1291
    %v1295 = vadd.f32 %v1256, %v1291
    %v1296 = vadd.f32 %v1257, %v1291
    %v1297 = vadd.f32 %v1258, %v1291
    %v1298 = vadd.f32 %v1259, %v1291
    %v1299 = vadd.f32 %v1260, %v1291
    %v1300 = vadd.f32 %v1261, %v1291
    %v1301 = vadd.f32 %v1262, %v1291
    %v1302 = vadd.f32 %v1263, %v1291
    %v1303 = vadd.f32 %v1264, %v1291
    %v1304 = vadd.f32 %v1265, %v1291
    %v1305 = vadd.f32 %v1266, %v1291
    %v1306 = vadd.f32 %v1267, %v1291
    %v1307 = vadd.f32 %v1268, %v1291
    %v1308 = vadd.f32 %v1269, %v1291
    %v1309 = vadd.f32 %v1270, %v1291
    %v1310 = vadd.f32 %v1271, %v1291
    %v1311 = vadd.f32 %v1272, %v1291
    %v1312 = vadd.f32 %v1273, %v1291
    %v1313 = vadd.f32 %v1274, %v1291
    %v1314 = vadd.f32 %v1275, %v1291
    %v1315 = vadd.f32 %v1276, %v1291
    %v1316 = vadd.f32 %v1277, %v1291
    %v1317 = vadd.f32 %v1278, %v1291
    %v1318 = vadd.f32 %v1279, %v1291
    %v1319 = vadd.f32 %v1280, %v1291
    %v1320 = vadd.f32 %v1281, %v1291
    %v1321 = vadd.f32 %v1282, %v1291
    %v1322 = vadd.f32 %v1283, %v1291
    %v1323 = vadd.f32 %v1284, %v1291
    %v1324 = vadd.f32 %v1285, %v1291
    %v1325 = vmax.f32 %v1293, 0.0
    %v1326 = vmax.f32 %v1294, 0.0
    %v1327 = vmax.f32 %v1295, 0.0
    %v1328 = vmax.f32 %v1296, 0.0
    %v1329 = vmax.f32 %v1297, 0.0
    %v1330 = vmax.f32 %v1298, 0.0
    %v1331 = vmax.f32 %v1299, 0.0
    %v1332 = vmax.f32 %v1300, 0.0
    %v1333 = vmax.f32 %v1301, 0.0
    %v1334 = vmax.f32 %v1302, 0.0
    %v1335 = vmax.f32 %v1303, 0.0
    %v1336 = vmax.f32 %v1304, 0.0
    %v1337 = vmax.f32 %v1305, 0.0
    %v1338 = vmax.f32 %v1306, 0.0
    %v1339 = vmax.f32 %v1307, 0.0
    %v1340 = vmax.f32 %v1308, 0.0
    %v1341 = vmax.f32 %v1309, 0.0
    %v1342 = vmax.f32 %v1310, 0.0
    %v1343 = vmax.f32 %v1311, 0.0
    %v1344 = vmax.f32 %v1312, 0.0
    %v1345 = vmax.f32 %v1313, 0.0
    %v1346 = vmax.f32 %v1314, 0.0
    %v1347 = vmax.f32 %v1315, 0.0
    %v1348 = vmax.f32 %v1316, 0.0
    %v1349 = vmax.f32 %v1317, 0.0
    %v1350 = vmax.f32 %v1318, 0.0
    %v1351 = vmax.f32 %v1319, 0.0
    %v1352 = vmax.f32 %v1320, 0.0
    %v1353 = vmax.f32 %v1321, 0.0
    %v1354 = vmax.f32 %v1322, 0.0
    %v1355 = vmax.f32 %v1323, 0.0
    %v1356 = vmax.f32 %v1324, 0.0
    %v1357 = vpack.c.bf16 %v1326, %v1325
    %v1358 = vpack.c.bf16 %v1328, %v1327
    %v1359 = vpack.c.bf16 %v1330, %v1329
    %v1360 = vpack.c.bf16 %v1332, %v1331
    %v1361 = vpack.c.bf16 %v1334, %v1333
    %v1362 = vpack.c.bf16 %v1336, %v1335
    %v1363 = vpack.c.bf16 %v1338, %v1337
    %v1364 = vpack.c.bf16 %v1340, %v1339
    %v1365 = vpack.c.bf16 %v1342, %v1341
    %v1366 = vpack.c.bf16 %v1344, %v1343
    %v1367 = vpack.c.bf16 %v1346, %v1345
    %v1368 = vpack.c.bf16 %v1348, %v1347
    %v1369 = vpack.c.bf16 %v1350, %v1349
    %v1370 = vpack.c.bf16 %v1352, %v1351
    %v1371 = vpack.c.bf16 %v1354, %v1353
    %v1372 = vpack.c.bf16 %v1356, %v1355
    %1373 = vmatprep.subr.bf16.mxu0 0
    %1374 = vmatpush1.bf16.msra.mxu0 %v1357
    %1375 = vmatprep.subr.bf16.mxu0 0
    %1376 = vmatpush1.bf16.msra.mxu0 %v1358
    %1377 = vmatprep.subr.bf16.mxu0 0
    %1378 = vmatpush1.bf16.msra.mxu0 %v1359
    %1379 = vmatprep.subr.bf16.mxu0 0
    %1380 = vmatpush1.bf16.msra.mxu0 %v1360
    %1381 = vmatprep.subr.bf16.mxu0 0
    %1382 = vmatpush1.bf16.msra.mxu0 %v1361
    %1383 = vmatprep.subr.bf16.mxu0 0
    %1384 = vmatpush1.bf16.msra.mxu0 %v1362
    %1385 = vmatprep.subr.bf16.mxu0 0
    %1386 = vmatpush1.bf16.msra.mxu0 %v1363
    %1387 = vmatprep.subr.bf16.mxu0 0
    %1388 = vmatpush1.bf16.msra.mxu0 %v1364
    %1389 = vmatprep.subr.bf16.mxu0 0
    %1390 = vmatpush1.bf16.msra.mxu0 %v1365
    %1391 = vmatprep.subr.bf16.mxu0 0
    %1392 = vmatpush1.bf16.msra.mxu0 %v1366
    %1393 = vmatprep.subr.bf16.mxu0 0
    %1394 = vmatpush1.bf16.msra.mxu0 %v1367
    %1395 = vmatprep.subr.bf16.mxu0 0
    %1396 = vmatpush1.bf16.msra.mxu0 %v1368
    %1397 = vmatprep.subr.bf16.mxu0 0
    %1398 = vmatpush1.bf16.msra.mxu0 %v1369
    %1399 = vmatprep.subr.bf16.mxu0 0
    %1400 = vmatpush1.bf16.msra.mxu0 %v1370
    %1401 = vmatprep.subr.bf16.mxu0 0
    %1402 = vmatpush1.bf16.msra.mxu0 %v1371
    %1403 = vmatprep.subr.bf16.mxu0 0
    %1404 = vmatpush1.bf16.msra.mxu0 %v1372
    %1405 = vmatprep.mubr.bf16.mxu0 %v247
    %1406 = vmatmul.mubr.bf16.gmra.mrb[0].mxu0 %v246
    %v1407 = vpop.f32.mrb[0].mxu0
    %v1408 = vadd.f32 0.0, %v1407
    %v1409 = vpop.f32.mrb[0].mxu0
    %v1410 = vpop.f32.mrb[0].mxu0
    %v1411 = vadd.f32 0.0, %v1410
    %v1412 = vpop.f32.mrb[0].mxu0
    %1413 = vmatprep.mubr.bf16.mxu0 %v249
    %1414 = vmatmul.mubr.bf16.gmra.mrb[0].mxu0 %v248
    %v1415 = vpop.f32.mrb[0].mxu0
    %v1416 = vadd.f32 0.0, %v1415
    %v1417 = vpop.f32.mrb[0].mxu0
    %v1418 = vpop.f32.mrb[0].mxu0
    %v1419 = vadd.f32 0.0, %v1418
    %v1420 = vpop.f32.mrb[0].mxu0
    %1421 = vmatprep.mubr.bf16.mxu0 %v251
    %1422 = vmatmul.mubr.bf16.gmra.mrb[0].mxu0 %v250
    %v1423 = vpop.f32.mrb[0].mxu0
    %v1424 = vadd.f32 0.0, %v1423
    %v1425 = vpop.f32.mrb[0].mxu0
    %v1426 = vpop.f32.mrb[0].mxu0
    %v1427 = vadd.f32 0.0, %v1426
    %v1428 = vpop.f32.mrb[0].mxu0
    %1429 = vmatprep.mubr.bf16.mxu0 %v253
    %1430 = vmatmul.mubr.bf16.gmra.mrb[0].mxu0 %v252
    %v1431 = vpop.f32.mrb[0].mxu0
    %v1432 = vadd.f32 0.0, %v1431
    %v1433 = vpop.f32.mrb[0].mxu0
    %v1434 = vpop.f32.mrb[0].mxu0
    %v1435 = vadd.f32 0.0, %v1434
    %v1436 = vpop.f32.mrb[0].mxu0
    %1437 = vmatprep.mubr.bf16.mxu0 %v255
    %1438 = vmatmul.mubr.bf16.gmra.mrb[0].mxu0 %v254
    %v1439 = vpop.f32.mrb[0].mxu0
    %v1440 = vadd.f32 0.0, %v1439
    %v1441 = vpop.f32.mrb[0].mxu0
    %v1442 = vpop.f32.mrb[0].mxu0
    %v1443 = vadd.f32 0.0, %v1442
    %v1444 = vpop.f32.mrb[0].mxu0
    %1445 = vmatprep.mubr.bf16.mxu0 %v257
    %1446 = vmatmul.mubr.bf16.gmra.mrb[0].mxu0 %v256
    %v1447 = vpop.f32.mrb[0].mxu0
    %v1448 = vadd.f32 0.0, %v1447
    %v1449 = vpop.f32.mrb[0].mxu0
    %v1450 = vpop.f32.mrb[0].mxu0
    %v1451 = vadd.f32 0.0, %v1450
    %v1452 = vpop.f32.mrb[0].mxu0
    %1453 = vmatprep.mubr.bf16.mxu0 %v259
    %1454 = vmatmul.mubr.bf16.gmra.mrb[0].mxu0 %v258
    %v1455 = vpop.f32.mrb[0].mxu0
    %v1456 = vadd.f32 0.0, %v1455
    %v1457 = vpop.f32.mrb[0].mxu0
    %v1458 = vpop.f32.mrb[0].mxu0
    %v1459 = vadd.f32 0.0, %v1458
    %v1460 = vpop.f32.mrb[0].mxu0
    %1461 = vmatprep.mubr.bf16.mxu0 %v261
    %1462 = vmatmul.mubr.bf16.gmra.mrb[0].mxu0 %v260
    %v1463 = vpop.f32.mrb[0].mxu0
    %v1464 = vadd.f32 0.0, %v1463
    %v1465 = vpop.f32.mrb[0].mxu0
    %v1466 = vpop.f32.mrb[0].mxu0
    %v1467 = vadd.f32 0.0, %v1466
    %v1468 = vpop.f32.mrb[0].mxu0
    %1469 = vmatprep.mubr.bf16.mxu0 %v263
    %1470 = vmatmul.mubr.bf16.gmra.mrb[0].mxu0 %v262
    %v1471 = vpop.f32.mrb[0].mxu0
    %v1472 = vadd.f32 0.0, %v1471
    %v1473 = vpop.f32.mrb[0].mxu0
    %v1474 = vpop.f32.mrb[0].mxu0
    %v1475 = vadd.f32 0.0, %v1474
    %v1476 = vpop.f32.mrb[0].mxu0
    %1477 = vmatprep.mubr.bf16.mxu0 %v265
    %1478 = vmatmul.mubr.bf16.gmra.mrb[0].mxu0 %v264
    %v1479 = vpop.f32.mrb[0].mxu0
    %v1480 = vadd.f32 0.0, %v1479
    %v1481 = vpop.f32.mrb[0].mxu0
    %v1482 = vpop.f32.mrb[0].mxu0
    %v1483 = vadd.f32 0.0, %v1482
    %v1484 = vpop.f32.mrb[0].mxu0
    %1485 = vmatprep.mubr.bf16.mxu0 %v267
    %1486 = vmatmul.mubr.bf16.gmra.mrb[0].mxu0 %v266
    %v1487 = vpop.f32.mrb[0].mxu0
    %v1488 = vadd.f32 0.0, %v1487
    %v1489 = vpop.f32.mrb[0].mxu0
    %v1490 = vpop.f32.mrb[0].mxu0
    %v1491 = vadd.f32 0.0, %v1490
    %v1492 = vpop.f32.mrb[0].mxu0
    %1493 = vmatprep.mubr.bf16.mxu0 %v269
    %1494 = vmatmul.mubr.bf16.gmra.mrb[0].mxu0 %v268
    %v1495 = vpop.f32.mrb[0].mxu0
    %v1496 = vadd.f32 0.0, %v1495
    %v1497 = vpop.f32.mrb[0].mxu0
    %v1498 = vpop.f32.mrb[0].mxu0
    %v1499 = vadd.f32 0.0, %v1498
    %v1500 = vpop.f32.mrb[0].mxu0
    %1501 = vmatprep.mubr.bf16.mxu0 %v271
    %1502 = vmatmul.mubr.bf16.gmra.mrb[0].mxu0 %v270
    %v1503 = vpop.f32.mrb[0].mxu0
    %v1504 = vadd.f32 0.0, %v1503
    %v1505 = vpop.f32.mrb[0].mxu0
    %v1506 = vpop.f32.mrb[0].mxu0
    %v1507 = vadd.f32 0.0, %v1506
    %v1508 = vpop.f32.mrb[0].mxu0
    %1509 = vmatprep.mubr.bf16.mxu0 %v273
    %1510 = vmatmul.mubr.bf16.gmra.mrb[0].mxu0 %v272
    %v1511 = vpop.f32.mrb[0].mxu0
    %v1512 = vadd.f32 0.0, %v1511
    %v1513 = vpop.f32.mrb[0].mxu0
    %v1514 = vpop.f32.mrb[0].mxu0
    %v1515 = vadd.f32 0.0, %v1514
    %v1516 = vpop.f32.mrb[0].mxu0
    %1517 = vmatprep.mubr.bf16.mxu0 %v275
    %1518 = vmatmul.mubr.bf16.gmra.mrb[0].mxu0 %v274
    %v1519 = vpop.f32.mrb[0].mxu0
    %v1520 = vadd.f32 0.0, %v1519
    %v1521 = vpop.f32.mrb[0].mxu0
    %v1522 = vpop.f32.mrb[0].mxu0
    %v1523 = vadd.f32 0.0, %v1522
    %v1524 = vpop.f32.mrb[0].mxu0
    %1525 = vmatprep.mubr.bf16.mxu0 %v277
    %1526 = vmatmul.mubr.bf16.gmra.mrb[0].mxu0 %v276
    %v1527 = vpop.f32.mrb[0].mxu0
    %v1528 = vadd.f32 0.0, %v1527
    %v1529 = vpop.f32.mrb[0].mxu0
    %v1530 = vpop.f32.mrb[0].mxu0
    %v1531 = vadd.f32 0.0, %v1530
    %v1532 = vpop.f32.mrb[0].mxu0
    %1533 = vdwg.mxu0
    %v1534 = vpack.c.bf16 %v1411, %v1408
    %v1535 = vpack.c.bf16 %v1419, %v1416
    %v1536 = vpack.c.bf16 %v1427, %v1424
    %v1537 = vpack.c.bf16 %v1435, %v1432
    %v1538 = vpack.c.bf16 %v1443, %v1440
    %v1539 = vpack.c.bf16 %v1451, %v1448
    %v1540 = vpack.c.bf16 %v1459, %v1456
    %v1541 = vpack.c.bf16 %v1467, %v1464
    %v1542 = vpack.c.bf16 %v1475, %v1472
    %v1543 = vpack.c.bf16 %v1483, %v1480
    %v1544 = vpack.c.bf16 %v1491, %v1488
    %v1545 = vpack.c.bf16 %v1499, %v1496
    %v1546 = vpack.c.bf16 %v1507, %v1504
    %v1547 = vpack.c.bf16 %v1515, %v1512
    %v1548 = vpack.c.bf16 %v1523, %v1520
    %v1549 = vpack.c.bf16 %v1531, %v1528
    %v1550 = vld [vmem:[#allocation8] sm:$0xf]
    %v1551 = vld [vmem:[#allocation8 + $0x4] sm:$0xf]
    %v1552 = vld [vmem:[#allocation8 + $0x8] sm:$0xf]
    %v1553 = vld [vmem:[#allocation8 + $0xc] sm:$0xf]
    %v1554 = vld [vmem:[#allocation8 + $0x10] sm:$0xf]
    %v1555 = vld [vmem:[#allocation8 + $0x14] sm:$0xf]
    %v1556 = vld [vmem:[#allocation8 + $0x18] sm:$0xf]
    %v1557 = vld [vmem:[#allocation8 + $0x1c] sm:$0xf]
    %v1558 = vld [vmem:[#allocation8 + $0x20] sm:$0xf]
    %v1559 = vld [vmem:[#allocation8 + $0x24] sm:$0xf]
    %v1560 = vld [vmem:[#allocation8 + $0x28] sm:$0xf]
    %v1561 = vld [vmem:[#allocation8 + $0x2c] sm:$0xf]
    %v1562 = vld [vmem:[#allocation8 + $0x30] sm:$0xf]
    %v1563 = vld [vmem:[#allocation8 + $0x34] sm:$0xf]
    %v1564 = vld [vmem:[#allocation8 + $0x38] sm:$0xf]
    %v1565 = vld [vmem:[#allocation8 + $0x3c] sm:$0xf]
    %v1566 = vld [vmem:[#allocation8 + $0x40] sm:$0xf]
    %v1567 = vld [vmem:[#allocation8 + $0x44] sm:$0xf]
    %v1568 = vld [vmem:[#allocation8 + $0x48] sm:$0xf]
    %v1569 = vld [vmem:[#allocation8 + $0x4c] sm:$0xf]
    %v1570 = vld [vmem:[#allocation8 + $0x50] sm:$0xf]
    %v1571 = vld [vmem:[#allocation8 + $0x54] sm:$0xf]
    %v1572 = vld [vmem:[#allocation8 + $0x58] sm:$0xf]
    %v1573 = vld [vmem:[#allocation8 + $0x5c] sm:$0xf]
    %v1574 = vld [vmem:[#allocation8 + $0x60] sm:$0xf]
    %v1575 = vld [vmem:[#allocation8 + $0x64] sm:$0xf]
    %v1576 = vld [vmem:[#allocation8 + $0x68] sm:$0xf]
    %v1577 = vld [vmem:[#allocation8 + $0x6c] sm:$0xf]
    %v1578 = vld [vmem:[#allocation8 + $0x70] sm:$0xf]
    %v1579 = vld [vmem:[#allocation8 + $0x74] sm:$0xf]
    %v1580 = vld [vmem:[#allocation8 + $0x78] sm:$0xf]
    %v1581 = vld [vmem:[#allocation8 + $0x7c] sm:$0xf]
    %v1598 = vunpack.c.l.b16 %v1566
    %v1599 = vunpack.c.l.b16 %v1567
    %v1600 = vunpack.c.l.b16 %v1568
    %v1601 = vunpack.c.l.b16 %v1569
    %v1602 = vunpack.c.l.b16 %v1570
    %v1603 = vunpack.c.l.b16 %v1571
    %v1604 = vunpack.c.l.b16 %v1572
    %v1605 = vunpack.c.l.b16 %v1573
    %v1606 = vunpack.c.l.b16 %v1574
    %v1607 = vunpack.c.l.b16 %v1575
    %v1608 = vunpack.c.l.b16 %v1576
    %v1609 = vunpack.c.l.b16 %v1577
    %v1610 = vunpack.c.l.b16 %v1578
    %v1611 = vunpack.c.l.b16 %v1579
    %v1612 = vunpack.c.l.b16 %v1580
    %v1613 = vunpack.c.l.b16 %v1581
    %v1614 = vpack.c.b16 %v1599, %v1598
    %v1615 = vpack.c.b16 %v1601, %v1600
    %v1616 = vpack.c.b16 %v1603, %v1602
    %v1617 = vpack.c.b16 %v1605, %v1604
    %v1618 = vpack.c.b16 %v1607, %v1606
    %v1619 = vpack.c.b16 %v1609, %v1608
    %v1620 = vpack.c.b16 %v1611, %v1610
    %v1621 = vpack.c.b16 %v1613, %v1612
    %1630 = vmatprep.subr.bf16.mxu0 0
    %1631 = vmatpush1.bf16.msra.mxu0 %v1614
    %1632 = vmatprep.subr.bf16.mxu0 0
    %1633 = vmatpush1.bf16.msra.mxu0 %v1615
    %1634 = vmatprep.subr.bf16.mxu0 0
    %1635 = vmatpush1.bf16.msra.mxu0 %v1616
    %1636 = vmatprep.subr.bf16.mxu0 0
    %1637 = vmatpush1.bf16.msra.mxu0 %v1617
    %1638 = vmatprep.subr.bf16.mxu0 0
    %1639 = vmatpush1.bf16.msra.mxu0 %v1618
    %1640 = vmatprep.subr.bf16.mxu0 0
    %1641 = vmatpush1.bf16.msra.mxu0 %v1619
    %1642 = vmatprep.subr.bf16.mxu0 0
    %1643 = vmatpush1.bf16.msra.mxu0 %v1620
    %1644 = vmatprep.subr.bf16.mxu0 0
    %1645 = vmatpush1.bf16.msra.mxu0 %v1621
    %1646 = vmatprep.subr.bf16.mxu0 0
    %1647 = vmatpush1.bf16.msra.mxu0 0
    %1648 = vmatprep.subr.bf16.mxu0 0
    %1649 = vmatpush1.bf16.msra.mxu0 0
    %1650 = vmatprep.subr.bf16.mxu0 0
    %1651 = vmatpush1.bf16.msra.mxu0 0
    %1652 = vmatprep.subr.bf16.mxu0 0
    %1653 = vmatpush1.bf16.msra.mxu0 0
    %1654 = vmatprep.subr.bf16.mxu0 0
    %1655 = vmatpush1.bf16.msra.mxu0 0
    %1656 = vmatprep.subr.bf16.mxu0 0
    %1657 = vmatpush1.bf16.msra.mxu0 0
    %1658 = vmatprep.subr.bf16.mxu0 0
    %1659 = vmatpush1.bf16.msra.mxu0 0
    %1660 = vmatprep.subr.bf16.mxu0 0
    %1661 = vmatpush1.bf16.msra.mxu0 0
    %1662 = vmatprep.mubr.bf16.mxu0 0
    %1663 = vmatmul.mubr.bf16.gmra.mrb[0].mxu0 %v1357
    %v1664 = vpop.f32.mrb[0].mxu0
    %v1665 = vadd.f32 0.0, %v1664
    %v1666 = vpop.f32.mrb[0].mxu0
    %v1667 = vpop.f32.mrb[0].mxu0
    %v1668 = vadd.f32 0.0, %v1667
    %v1669 = vpop.f32.mrb[0].mxu0
    %1670 = vmatprep.mubr.bf16.mxu0 0
    %1671 = vmatmul.mubr.bf16.gmra.mrb[0].mxu0 %v1358
    %v1672 = vpop.f32.mrb[0].mxu0
    %v1673 = vadd.f32 0.0, %v1672
    %v1674 = vpop.f32.mrb[0].mxu0
    %v1675 = vpop.f32.mrb[0].mxu0
    %v1676 = vadd.f32 0.0, %v1675
    %v1677 = vpop.f32.mrb[0].mxu0
    %1678 = vmatprep.mubr.bf16.mxu0 0
    %1679 = vmatmul.mubr.bf16.gmra.mrb[0].mxu0 %v1359
    %v1680 = vpop.f32.mrb[0].mxu0
    %v1681 = vadd.f32 0.0, %v1680
    %v1682 = vpop.f32.mrb[0].mxu0
    %v1683 = vpop.f32.mrb[0].mxu0
    %v1684 = vadd.f32 0.0, %v1683
    %v1685 = vpop.f32.mrb[0].mxu0
    %1686 = vmatprep.mubr.bf16.mxu0 0
    %1687 = vmatmul.mubr.bf16.gmra.mrb[0].mxu0 %v1360
    %v1688 = vpop.f32.mrb[0].mxu0
    %v1689 = vadd.f32 0.0, %v1688
    %v1690 = vpop.f32.mrb[0].mxu0
    %v1691 = vpop.f32.mrb[0].mxu0
    %v1692 = vadd.f32 0.0, %v1691
    %v1693 = vpop.f32.mrb[0].mxu0
    %1694 = vmatprep.mubr.bf16.mxu0 0
    %1695 = vmatmul.mubr.bf16.gmra.mrb[0].mxu0 %v1361
    %v1696 = vpop.f32.mrb[0].mxu0
    %v1697 = vadd.f32 0.0, %v1696
    %v1698 = vpop.f32.mrb[0].mxu0
    %v1699 = vpop.f32.mrb[0].mxu0
    %v1700 = vadd.f32 0.0, %v1699
    %v1701 = vpop.f32.mrb[0].mxu0
    %1702 = vmatprep.mubr.bf16.mxu0 0
    %1703 = vmatmul.mubr.bf16.gmra.mrb[0].mxu0 %v1362
    %v1704 = vpop.f32.mrb[0].mxu0
    %v1705 = vadd.f32 0.0, %v1704
    %v1706 = vpop.f32.mrb[0].mxu0
    %v1707 = vpop.f32.mrb[0].mxu0
    %v1708 = vadd.f32 0.0, %v1707
    %v1709 = vpop.f32.mrb[0].mxu0
    %1710 = vmatprep.mubr.bf16.mxu0 0
    %1711 = vmatmul.mubr.bf16.gmra.mrb[0].mxu0 %v1363
    %v1712 = vpop.f32.mrb[0].mxu0
    %v1713 = vadd.f32 0.0, %v1712
    %v1714 = vpop.f32.mrb[0].mxu0
    %v1715 = vpop.f32.mrb[0].mxu0
    %v1716 = vadd.f32 0.0, %v1715
    %v1717 = vpop.f32.mrb[0].mxu0
    %1718 = vmatprep.mubr.bf16.mxu0 0
    %1719 = vmatmul.mubr.bf16.gmra.mrb[0].mxu0 %v1364
    %v1720 = vpop.f32.mrb[0].mxu0
    %v1721 = vadd.f32 0.0, %v1720
    %v1722 = vpop.f32.mrb[0].mxu0
    %v1723 = vpop.f32.mrb[0].mxu0
    %v1724 = vadd.f32 0.0, %v1723
    %v1725 = vpop.f32.mrb[0].mxu0
    %1726 = vmatprep.mubr.bf16.mxu0 0
    %1727 = vmatmul.mubr.bf16.gmra.mrb[0].mxu0 %v1365
    %v1728 = vpop.f32.mrb[0].mxu0
    %v1729 = vadd.f32 0.0, %v1728
    %v1730 = vpop.f32.mrb[0].mxu0
    %v1731 = vpop.f32.mrb[0].mxu0
    %v1732 = vadd.f32 0.0, %v1731
    %v1733 = vpop.f32.mrb[0].mxu0
    %1734 = vmatprep.mubr.bf16.mxu0 0
    %1735 = vmatmul.mubr.bf16.gmra.mrb[0].mxu0 %v1366
    %v1736 = vpop.f32.mrb[0].mxu0
    %v1737 = vadd.f32 0.0, %v1736
    %v1738 = vpop.f32.mrb[0].mxu0
    %v1739 = vpop.f32.mrb[0].mxu0
    %v1740 = vadd.f32 0.0, %v1739
    %v1741 = vpop.f32.mrb[0].mxu0
    %1742 = vmatprep.mubr.bf16.mxu0 0
    %1743 = vmatmul.mubr.bf16.gmra.mrb[0].mxu0 %v1367
    %v1744 = vpop.f32.mrb[0].mxu0
    %v1745 = vadd.f32 0.0, %v1744
    %v1746 = vpop.f32.mrb[0].mxu0
    %v1747 = vpop.f32.mrb[0].mxu0
    %v1748 = vadd.f32 0.0, %v1747
    %v1749 = vpop.f32.mrb[0].mxu0
    %1750 = vmatprep.mubr.bf16.mxu0 0
    %1751 = vmatmul.mubr.bf16.gmra.mrb[0].mxu0 %v1368
    %v1752 = vpop.f32.mrb[0].mxu0
    %v1753 = vadd.f32 0.0, %v1752
    %v1754 = vpop.f32.mrb[0].mxu0
    %v1755 = vpop.f32.mrb[0].mxu0
    %v1756 = vadd.f32 0.0, %v1755
    %v1757 = vpop.f32.mrb[0].mxu0
    %1758 = vmatprep.mubr.bf16.mxu0 0
    %1759 = vmatmul.mubr.bf16.gmra.mrb[0].mxu0 %v1369
    %v1760 = vpop.f32.mrb[0].mxu0
    %v1761 = vadd.f32 0.0, %v1760
    %v1762 = vpop.f32.mrb[0].mxu0
    %v1763 = vpop.f32.mrb[0].mxu0
    %v1764 = vadd.f32 0.0, %v1763
    %v1765 = vpop.f32.mrb[0].mxu0
    %1766 = vmatprep.mubr.bf16.mxu0 0
    %1767 = vmatmul.mubr.bf16.gmra.mrb[0].mxu0 %v1370
    %v1768 = vpop.f32.mrb[0].mxu0
    %v1769 = vadd.f32 0.0, %v1768
    %v1770 = vpop.f32.mrb[0].mxu0
    %v1771 = vpop.f32.mrb[0].mxu0
    %v1772 = vadd.f32 0.0, %v1771
    %v1773 = vpop.f32.mrb[0].mxu0
    %1774 = vmatprep.mubr.bf16.mxu0 0
    %1775 = vmatmul.mubr.bf16.gmra.mrb[0].mxu0 %v1371
    %v1776 = vpop.f32.mrb[0].mxu0
    %v1777 = vadd.f32 0.0, %v1776
    %v1778 = vpop.f32.mrb[0].mxu0
    %v1779 = vpop.f32.mrb[0].mxu0
    %v1780 = vadd.f32 0.0, %v1779
    %v1781 = vpop.f32.mrb[0].mxu0
    %1782 = vmatprep.mubr.bf16.mxu0 0
    %1783 = vmatmul.mubr.bf16.gmra.mrb[0].mxu0 %v1372
    %v1784 = vpop.f32.mrb[0].mxu0
    %v1785 = vadd.f32 0.0, %v1784
    %v1786 = vpop.f32.mrb[0].mxu0
    %v1787 = vpop.f32.mrb[0].mxu0
    %v1788 = vadd.f32 0.0, %v1787
    %v1789 = vpop.f32.mrb[0].mxu0
    %1790 = vdwg.mxu0
    %v1807 = vunpack.c.l.b16 %v1550
    %v1808 = vunpack.c.l.b16 %v1551
    %v1809 = vunpack.c.l.b16 %v1552
    %v1810 = vunpack.c.l.b16 %v1553
    %v1811 = vunpack.c.l.b16 %v1554
    %v1812 = vunpack.c.l.b16 %v1555
    %v1813 = vunpack.c.l.b16 %v1556
    %v1814 = vunpack.c.l.b16 %v1557
    %v1815 = vunpack.c.l.b16 %v1558
    %v1816 = vunpack.c.l.b16 %v1559
    %v1817 = vunpack.c.l.b16 %v1560
    %v1818 = vunpack.c.l.b16 %v1561
    %v1819 = vunpack.c.l.b16 %v1562
    %v1820 = vunpack.c.l.b16 %v1563
    %v1821 = vunpack.c.l.b16 %v1564
    %v1822 = vunpack.c.l.b16 %v1565
    %v1823 = vpack.c.b16 %v1808, %v1807
    %v1824 = vpack.c.b16 %v1810, %v1809
    %v1825 = vpack.c.b16 %v1812, %v1811
    %v1826 = vpack.c.b16 %v1814, %v1813
    %v1827 = vpack.c.b16 %v1816, %v1815
    %v1828 = vpack.c.b16 %v1818, %v1817
    %v1829 = vpack.c.b16 %v1820, %v1819
    %v1830 = vpack.c.b16 %v1822, %v1821
    %1839 = vmatprep.subr.bf16.mxu0 0
    %1840 = vmatpush1.bf16.msra.mxu0 %v1823
    %1841 = vmatprep.subr.bf16.mxu0 0
    %1842 = vmatpush1.bf16.msra.mxu0 %v1824
    %1843 = vmatprep.subr.bf16.mxu0 0
    %1844 = vmatpush1.bf16.msra.mxu0 %v1825
    %1845 = vmatprep.subr.bf16.mxu0 0
    %1846 = vmatpush1.bf16.msra.mxu0 %v1826
    %1847 = vmatprep.subr.bf16.mxu0 0
    %1848 = vmatpush1.bf16.msra.mxu0 %v1827
    %1849 = vmatprep.subr.bf16.mxu0 0
    %1850 = vmatpush1.bf16.msra.mxu0 %v1828
    %1851 = vmatprep.subr.bf16.mxu0 0
    %1852 = vmatpush1.bf16.msra.mxu0 %v1829
    %1853 = vmatprep.subr.bf16.mxu0 0
    %1854 = vmatpush1.bf16.msra.mxu0 %v1830
    %1855 = vmatprep.subr.bf16.mxu0 0
    %1856 = vmatpush1.bf16.msra.mxu0 0
    %1857 = vmatprep.subr.bf16.mxu0 0
    %1858 = vmatpush1.bf16.msra.mxu0 0
    %1859 = vmatprep.subr.bf16.mxu0 0
    %1860 = vmatpush1.bf16.msra.mxu0 0
    %1861 = vmatprep.subr.bf16.mxu0 0
    %1862 = vmatpush1.bf16.msra.mxu0 0
    %1863 = vmatprep.subr.bf16.mxu0 0
    %1864 = vmatpush1.bf16.msra.mxu0 0
    %1865 = vmatprep.subr.bf16.mxu0 0
    %1866 = vmatpush1.bf16.msra.mxu0 0
    %1867 = vmatprep.subr.bf16.mxu0 0
    %1868 = vmatpush1.bf16.msra.mxu0 0
    %1869 = vmatprep.subr.bf16.mxu0 0
    %1870 = vmatpush1.bf16.msra.mxu0 0
    %1871 = vmatprep.mubr.bf16.mxu0 0
    %1872 = vmatmul.mubr.bf16.gmra.mrb[0].mxu0 %v1534
    %v1873 = vpop.f32.mrb[0].mxu0
    %v1874 = vadd.f32 %v1665, %v1873
    %v1875 = vpop.f32.mrb[0].mxu0
    %v1876 = vpop.f32.mrb[0].mxu0
    %v1877 = vadd.f32 %v1668, %v1876
    %v1878 = vpop.f32.mrb[0].mxu0
    %1879 = vmatprep.mubr.bf16.mxu0 0
    %1880 = vmatmul.mubr.bf16.gmra.mrb[0].mxu0 %v1535
    %v1881 = vpop.f32.mrb[0].mxu0
    %v1882 = vadd.f32 %v1673, %v1881
    %v1883 = vpop.f32.mrb[0].mxu0
    %v1884 = vpop.f32.mrb[0].mxu0
    %v1885 = vadd.f32 %v1676, %v1884
    %v1886 = vpop.f32.mrb[0].mxu0
    %1887 = vmatprep.mubr.bf16.mxu0 0
    %1888 = vmatmul.mubr.bf16.gmra.mrb[0].mxu0 %v1536
    %v1889 = vpop.f32.mrb[0].mxu0
    %v1890 = vadd.f32 %v1681, %v1889
    %v1891 = vpop.f32.mrb[0].mxu0
    %v1892 = vpop.f32.mrb[0].mxu0
    %v1893 = vadd.f32 %v1684, %v1892
    %v1894 = vpop.f32.mrb[0].mxu0
    %1895 = vmatprep.mubr.bf16.mxu0 0
    %1896 = vmatmul.mubr.bf16.gmra.mrb[0].mxu0 %v1537
    %v1897 = vpop.f32.mrb[0].mxu0
    %v1898 = vadd.f32 %v1689, %v1897
    %v1899 = vpop.f32.mrb[0].mxu0
    %v1900 = vpop.f32.mrb[0].mxu0
    %v1901 = vadd.f32 %v1692, %v1900
    %v1902 = vpop.f32.mrb[0].mxu0
    %1903 = vmatprep.mubr.bf16.mxu0 0
    %1904 = vmatmul.mubr.bf16.gmra.mrb[0].mxu0 %v1538
    %v1905 = vpop.f32.mrb[0].mxu0
    %v1906 = vadd.f32 %v1697, %v1905
    %v1907 = vpop.f32.mrb[0].mxu0
    %v1908 = vpop.f32.mrb[0].mxu0
    %v1909 = vadd.f32 %v1700, %v1908
    %v1910 = vpop.f32.mrb[0].mxu0
    %1911 = vmatprep.mubr.bf16.mxu0 0
    %1912 = vmatmul.mubr.bf16.gmra.mrb[0].mxu0 %v1539
    %v1913 = vpop.f32.mrb[0].mxu0
    %v1914 = vadd.f32 %v1705, %v1913
    %v1915 = vpop.f32.mrb[0].mxu0
    %v1916 = vpop.f32.mrb[0].mxu0
    %v1917 = vadd.f32 %v1708, %v1916
    %v1918 = vpop.f32.mrb[0].mxu0
    %1919 = vmatprep.mubr.bf16.mxu0 0
    %1920 = vmatmul.mubr.bf16.gmra.mrb[0].mxu0 %v1540
    %v1921 = vpop.f32.mrb[0].mxu0
    %v1922 = vadd.f32 %v1713, %v1921
    %v1923 = vpop.f32.mrb[0].mxu0
    %v1924 = vpop.f32.mrb[0].mxu0
    %v1925 = vadd.f32 %v1716, %v1924
    %v1926 = vpop.f32.mrb[0].mxu0
    %1927 = vmatprep.mubr.bf16.mxu0 0
    %1928 = vmatmul.mubr.bf16.gmra.mrb[0].mxu0 %v1541
    %v1929 = vpop.f32.mrb[0].mxu0
    %v1930 = vadd.f32 %v1721, %v1929
    %v1931 = vpop.f32.mrb[0].mxu0
    %v1932 = vpop.f32.mrb[0].mxu0
    %v1933 = vadd.f32 %v1724, %v1932
    %v1934 = vpop.f32.mrb[0].mxu0
    %1935 = vmatprep.mubr.bf16.mxu0 0
    %1936 = vmatmul.mubr.bf16.gmra.mrb[0].mxu0 %v1542
    %v1937 = vpop.f32.mrb[0].mxu0
    %v1938 = vadd.f32 %v1729, %v1937
    %v1939 = vpop.f32.mrb[0].mxu0
    %v1940 = vpop.f32.mrb[0].mxu0
    %v1941 = vadd.f32 %v1732, %v1940
    %v1942 = vpop.f32.mrb[0].mxu0
    %1943 = vmatprep.mubr.bf16.mxu0 0
    %1944 = vmatmul.mubr.bf16.gmra.mrb[0].mxu0 %v1543
    %v1945 = vpop.f32.mrb[0].mxu0
    %v1946 = vadd.f32 %v1737, %v1945
    %v1947 = vpop.f32.mrb[0].mxu0
    %v1948 = vpop.f32.mrb[0].mxu0
    %v1949 = vadd.f32 %v1740, %v1948
    %v1950 = vpop.f32.mrb[0].mxu0
    %1951 = vmatprep.mubr.bf16.mxu0 0
    %1952 = vmatmul.mubr.bf16.gmra.mrb[0].mxu0 %v1544
    %v1953 = vpop.f32.mrb[0].mxu0
    %v1954 = vadd.f32 %v1745, %v1953
    %v1955 = vpop.f32.mrb[0].mxu0
    %v1956 = vpop.f32.mrb[0].mxu0
    %v1957 = vadd.f32 %v1748, %v1956
    %v1958 = vpop.f32.mrb[0].mxu0
    %1959 = vmatprep.mubr.bf16.mxu0 0
    %1960 = vmatmul.mubr.bf16.gmra.mrb[0].mxu0 %v1545
    %v1961 = vpop.f32.mrb[0].mxu0
    %v1962 = vadd.f32 %v1753, %v1961
    %v1963 = vpop.f32.mrb[0].mxu0
    %v1964 = vpop.f32.mrb[0].mxu0
    %v1965 = vadd.f32 %v1756, %v1964
    %v1966 = vpop.f32.mrb[0].mxu0
    %1967 = vmatprep.mubr.bf16.mxu0 0
    %1968 = vmatmul.mubr.bf16.gmra.mrb[0].mxu0 %v1546
    %v1969 = vpop.f32.mrb[0].mxu0
    %v1970 = vadd.f32 %v1761, %v1969
    %v1971 = vpop.f32.mrb[0].mxu0
    %v1972 = vpop.f32.mrb[0].mxu0
    %v1973 = vadd.f32 %v1764, %v1972
    %v1974 = vpop.f32.mrb[0].mxu0
    %1975 = vmatprep.mubr.bf16.mxu0 0
    %1976 = vmatmul.mubr.bf16.gmra.mrb[0].mxu0 %v1547
    %v1977 = vpop.f32.mrb[0].mxu0
    %v1978 = vadd.f32 %v1769, %v1977
    %v1979 = vpop.f32.mrb[0].mxu0
    %v1980 = vpop.f32.mrb[0].mxu0
    %v1981 = vadd.f32 %v1772, %v1980
    %v1982 = vpop.f32.mrb[0].mxu0
    %1983 = vmatprep.mubr.bf16.mxu0 0
    %1984 = vmatmul.mubr.bf16.gmra.mrb[0].mxu0 %v1548
    %v1985 = vpop.f32.mrb[0].mxu0
    %v1986 = vadd.f32 %v1777, %v1985
    %v1987 = vpop.f32.mrb[0].mxu0
    %v1988 = vpop.f32.mrb[0].mxu0
    %v1989 = vadd.f32 %v1780, %v1988
    %v1990 = vpop.f32.mrb[0].mxu0
    %1991 = vmatprep.mubr.bf16.mxu0 0
    %1992 = vmatmul.mubr.bf16.gmra.mrb[0].mxu0 %v1549
    %v1993 = vpop.f32.mrb[0].mxu0
    %v1994 = vadd.f32 %v1785, %v1993
    %v1995 = vpop.f32.mrb[0].mxu0
    %v1996 = vpop.f32.mrb[0].mxu0
    %v1997 = vadd.f32 %v1788, %v1996
    %v1998 = vpop.f32.mrb[0].mxu0
    %1999 = vdwg.mxu0
    %v2000 = vld [vmem:[%s7] sm:$0x1]
    %v2002 = vlaneseq
    %v2003 = vshrl.u32 %v2002, 7
    %v2004 = vsub.s32 0, %v2003
    %v2005 = vrot.slane %v2000, %v2004
    %v2007 = vadd.f32 %v1874, %v2005
    %v2008 = vadd.f32 %v1877, %v2005
    %v2009 = vadd.f32 %v1882, %v2005
    %v2010 = vadd.f32 %v1885, %v2005
    %v2011 = vadd.f32 %v1890, %v2005
    %v2012 = vadd.f32 %v1893, %v2005
    %v2013 = vadd.f32 %v1898, %v2005
    %v2014 = vadd.f32 %v1901, %v2005
    %v2015 = vadd.f32 %v1906, %v2005
    %v2016 = vadd.f32 %v1909, %v2005
    %v2017 = vadd.f32 %v1914, %v2005
    %v2018 = vadd.f32 %v1917, %v2005
    %v2019 = vadd.f32 %v1922, %v2005
    %v2020 = vadd.f32 %v1925, %v2005
    %v2021 = vadd.f32 %v1930, %v2005
    %v2022 = vadd.f32 %v1933, %v2005
    %v2023 = vadd.f32 %v1938, %v2005
    %v2024 = vadd.f32 %v1941, %v2005
    %v2025 = vadd.f32 %v1946, %v2005
    %v2026 = vadd.f32 %v1949, %v2005
    %v2027 = vadd.f32 %v1954, %v2005
    %v2028 = vadd.f32 %v1957, %v2005
    %v2029 = vadd.f32 %v1962, %v2005
    %v2030 = vadd.f32 %v1965, %v2005
    %v2031 = vadd.f32 %v1970, %v2005
    %v2032 = vadd.f32 %v1973, %v2005
    %v2033 = vadd.f32 %v1978, %v2005
    %v2034 = vadd.f32 %v1981, %v2005
    %v2035 = vadd.f32 %v1986, %v2005
    %v2036 = vadd.f32 %v1989, %v2005
    %v2037 = vadd.f32 %v1994, %v2005
    %v2038 = vadd.f32 %v1997, %v2005
    %2039 = vst [vmem:[#allocation10] sm:$0xff] %v2007
    %2040 = vst [vmem:[#allocation10 + $0x8] sm:$0xff] %v2008
    %2041 = vst [vmem:[#allocation10 + $0x10] sm:$0xff] %v2009
    %2042 = vst [vmem:[#allocation10 + $0x18] sm:$0xff] %v2010
    %2043 = vst [vmem:[#allocation10 + $0x20] sm:$0xff] %v2011
    %2044 = vst [vmem:[#allocation10 + $0x28] sm:$0xff] %v2012
    %2045 = vst [vmem:[#allocation10 + $0x30] sm:$0xff] %v2013
    %2046 = vst [vmem:[#allocation10 + $0x38] sm:$0xff] %v2014
    %2047 = vst [vmem:[#allocation10 + $0x40] sm:$0xff] %v2015
    %2048 = vst [vmem:[#allocation10 + $0x48] sm:$0xff] %v2016
    %2049 = vst [vmem:[#allocation10 + $0x50] sm:$0xff] %v2017
    %2050 = vst [vmem:[#allocation10 + $0x58] sm:$0xff] %v2018
    %2051 = vst [vmem:[#allocation10 + $0x60] sm:$0xff] %v2019
    %2052 = vst [vmem:[#allocation10 + $0x68] sm:$0xff] %v2020
    %2053 = vst [vmem:[#allocation10 + $0x70] sm:$0xff] %v2021
    %2054 = vst [vmem:[#allocation10 + $0x78] sm:$0xff] %v2022
    %2055 = vst [vmem:[#allocation10 + $0x80] sm:$0xff] %v2023
    %2056 = vst [vmem:[#allocation10 + $0x88] sm:$0xff] %v2024
    %2057 = vst [vmem:[#allocation10 + $0x90] sm:$0xff] %v2025
    %2058 = vst [vmem:[#allocation10 + $0x98] sm:$0xff] %v2026
    %2059 = vst [vmem:[#allocation10 + $0xa0] sm:$0xff] %v2027
    %2060 = vst [vmem:[#allocation10 + $0xa8] sm:$0xff] %v2028
    %2061 = vst [vmem:[#allocation10 + $0xb0] sm:$0xff] %v2029
    %2062 = vst [vmem:[#allocation10 + $0xb8] sm:$0xff] %v2030
    %2063 = vst [vmem:[#allocation10 + $0xc0] sm:$0xff] %v2031
    %2064 = vst [vmem:[#allocation10 + $0xc8] sm:$0xff] %v2032
    %2065 = vst [vmem:[#allocation10 + $0xd0] sm:$0xff] %v2033
    %2066 = vst [vmem:[#allocation10 + $0xd8] sm:$0xff] %v2034
    %2067 = vst [vmem:[#allocation10 + $0xe0] sm:$0xff] %v2035
    %2068 = vst [vmem:[#allocation10 + $0xe8] sm:$0xff] %v2036
    %2069 = vst [vmem:[#allocation10 + $0xf0] sm:$0xff] %v2037
    %2070 = vst [vmem:[#allocation10 + $0xf8] sm:$0xff] %v2038
    // Predicated region
    $region50: #{tpu_custom_call.1} parent=1 // pred_check
      _
    $region51: #{tpu_custom_call.1} parent=1 // pred_check_branch
      %2072 = sbr.rel (0) target = $region53
    $region52: #{tpu_custom_call.1} parent=1 // pred_region
      %s2074 = ssub.s32 4096, 4096
      %2075 = vsyncadd [#allocation4], %s2074
      %s2076 = sshll.u32 [#allocation10], 4
      %s2077 = int_to_ptr.vmem [resolvable:$true] %s2076
      %2082 = dma.vmem_to_hbm [thread:$0]  %s2077, 4096, %s8, [#allocation4], 128, 128, 8
    $region53: #{tpu_custom_call.1} parent=1 // pred_fallthru
      _
    // Predicated region
    $region54: #{tpu_custom_call.1} parent=1 // pred_check
      _
    $region55: #{tpu_custom_call.1} parent=1 // pred_check_branch
      %2084 = sbr.rel (0) target = $region57
    $region56: #{tpu_custom_call.1} parent=1 // pred_region
      %2085 = dma.done [#allocation4], 4096
    $region57: #{tpu_custom_call.1} parent=1 // pred_fallthru
      _
    %2086 = vsyncpa [#allocation3], 1
    %2087 = vsyncpa [#allocation6], 1
    %2088 = vsyncpa [#allocation9], 1
    %2089 = vsyncpa [#allocation4], 1

</llo_original>
